<compile_context>
chip_gen: v6e
topology: v6e:2x2x1
jax: 0.10.0
libtpu: 0.0.40
codegen_flags: <defaults>
</compile_context>

<pallas_src>
import functools

import jax
import jax.numpy as jnp
from jax.experimental import pallas as pl


# ----------------------------------------------------------------------------
# Pallas kernel: full Model forward (n_heads GAT layers + output GAT layer).
# Small graph -> everything fits in a single block, single grid point.
# TODO(synk): if num_nodes grows past ~1k, tile the (N,N) attention with an
# online softmax and raise vmem_limit_bytes (v7x only has 64 MiB VMEM).
# ----------------------------------------------------------------------------
def _fused_gat_kernel(x_ref, w1_ref, p2_ref, out_ref, *,
                      n_heads, hidden, t_steps, f_node, neg_slope):
    N = out_ref.shape[0]
    t_out = out_ref.shape[1]
    hh = n_heads * hidden
    f_in = t_steps * f_node

    # ---- Multi-head input projection, all heads in one lane-dense array. ---
    # Wh_all[n, h*hidden+f] = sum_{t,k} x[0,t,n,k] * W_h[t*f_node+k, f].
    # The (T,N,F)->(N,T*F) permutation of the PyTorch forward is folded into
    # the contraction, so x is consumed in its original HBM layout.
    Wh_all = jnp.dot(x_ref[0, 0, :, :], w1_ref[0:f_node, :],
                     preferred_element_type=jnp.float32)              # (N, HH)
    for t in range(1, t_steps):
        Wh_all = Wh_all + jnp.dot(
            x_ref[0, t, :, :], w1_ref[t * f_node:(t + 1) * f_node, :],
            preferred_element_type=jnp.float32)

    # ---- Attention projections for ALL heads (two small matmuls). ----------
    a1_blk = p2_ref[0:hh, 0:n_heads]              # (HH, H) block-diag columns
    a2t = w1_ref[f_in:f_in + n_heads, :]          # (H, HH) block rows
    wh1_cols = jnp.dot(Wh_all, a1_blk,
                       preferred_element_type=jnp.float32)            # (N, H)
    wh2_rows = jax.lax.dot_general(a2t, Wh_all, (((1,), (1,)), ((), ())),
                                   preferred_element_type=jnp.float32)  # (H, N)

    # In-kernel adjacency: Model's adj_mat is ones(N,N) with zero diagonal,
    # so "adj_mat > 0" is simply "row != col".
    row_id = jax.lax.broadcasted_iota(jnp.int32, (N, N), 0)
    col_id = jax.lax.broadcasted_iota(jnp.int32, (N, N), 1)
    off_diag = row_id != col_id

    def attend(wh1_col, wh2_row, wh_vals):
        # e[i, j] = Wh1[i] + Wh2[j] (broadcast add), LeakyReLU (slope 0.01 =
        # nn.LeakyReLU() default), adjacency mask, row softmax, att @ Wh.
        e = wh1_col + wh2_row                                         # (N, N)
        e = jnp.where(e > 0, e, neg_slope * e)
        masked = jnp.where(off_diag, e, -9e15)                        # scalar fill
        m = jnp.max(masked, axis=1, keepdims=True)
        p = jnp.exp(masked - m)
        att = p * pl.reciprocal(jnp.sum(p, axis=1, keepdims=True), approx=True)
        # TODO(synk): nn.Dropout(0.1) after softmax is identity (eval mode).
        return jnp.dot(att, wh_vals, preferred_element_type=jnp.float32)

    # ---- Hidden GAT heads (concat=True -> ELU), statically unrolled. -------
    # TODO(synk): for large n_heads switch to fori_loop + VMEM scratch to
    # bound live ranges; at H=2 the static unroll is cheapest.
    heads = []
    for h in range(n_heads):
        hp = attend(wh1_cols[:, h:h + 1],
                    wh2_rows[h:h + 1, :],
                    Wh_all[:, h * hidden:(h + 1) * hidden])
        # F.elu (alpha=1); exp(x)-1 (expm1 would be marginally more accurate).
        heads.append(jnp.where(hp > 0, hp, jnp.exp(hp) - 1.0))
    h_cat = jnp.concatenate(heads, axis=1)                            # (N, HH)
    # TODO(synk): nn.Dropout(0.1) between layers is identity (eval mode).

    # ---- Output GAT layer (concat=False). -----------------------------------
    w_out = p2_ref[0:hh, n_heads:n_heads + t_out]                     # (HH, T)
    a1o = p2_ref[hh:hh + 1, n_heads:n_heads + t_out]                  # (1, T)
    a2o = p2_ref[hh + 1:hh + 2, n_heads:n_heads + t_out]              # (1, T)
    wh_o = jnp.dot(h_cat, w_out, preferred_element_type=jnp.float32)  # (N, T)
    wh1_o = jax.lax.dot_general(wh_o, a1o, (((1,), (1,)), ((), ())),
                                preferred_element_type=jnp.float32)   # (N, 1)
    wh2_o = jax.lax.dot_general(a2o, wh_o, (((1,), (1,)), ((), ())),
                                preferred_element_type=jnp.float32)   # (1, N)
    out_ref[...] = attend(wh1_o, wh2_o, wh_o)


# ----------------------------------------------------------------------------
# Wrapper: single pallas_call, 3 input DMAs (x + 2 packed parameter buffers).
# ----------------------------------------------------------------------------
def fused_gat_forward(x4d, w1p, p2):
    assert x4d.shape[0] == 1, "Batch size should be 1"
    _, t_steps, num_nodes, f_node = x4d.shape
    hh = w1p.shape[1]
    n_heads = p2.shape[1] - t_steps
    hidden = hh // n_heads

    kernel = functools.partial(_fused_gat_kernel, n_heads=n_heads, hidden=hidden,
                               t_steps=t_steps, f_node=f_node, neg_slope=0.01)
    return pl.pallas_call(
        kernel,
        out_shape=jax.ShapeDtypeStruct((num_nodes, t_steps), jnp.float32),
        in_specs=[
            pl.BlockSpec(x4d.shape, lambda: (0, 0, 0, 0)),
            pl.BlockSpec(w1p.shape, lambda: (0, 0)),
            pl.BlockSpec(p2.shape, lambda: (0, 0)),
        ],
        out_specs=pl.BlockSpec((num_nodes, t_steps), lambda: (0, 0)),
    )(x4d, w1p, p2)


# ----------------------------------------------------------------------------
# Parameter init (xavier_uniform, gain=1.414) packed into two flat buffers.
# ----------------------------------------------------------------------------
def xavier_uniform(key, shape, gain=1.414):
    fan_out, fan_in = shape[0], shape[1]  # PyTorch convention for 2-D tensors
    bound = gain * (6.0 / (fan_in + fan_out)) ** 0.5
    return jax.random.uniform(key, shape, jnp.float32, -bound, bound)


def init_packed_params(key, in_features, hidden, n_heads, timestep_max):
    hh = n_heads * hidden
    Ws, a1s, a2s = [], [], []
    for _ in range(n_heads):
        key, kw, ka = jax.random.split(key, 3)
        Ws.append(xavier_uniform(kw, (in_features, hidden)))
        a = xavier_uniform(ka, (2 * hidden, 1))
        a1s.append(a[:hidden, 0])
        a2s.append(a[hidden:, 0])
    key, kw, ka = jax.random.split(key, 3)
    w_out = xavier_uniform(kw, (hh, timestep_max))
    a_out = xavier_uniform(ka, (2 * timestep_max, 1))

    # Buffer 1 (w1p): rows [0:F_in] = W_all = concat_h W_h; rows [F_in:F_in+H]
    # hold a2_h in lanes [h*hidden:(h+1)*hidden] (lane-dense Wh2 rows matmul).
    w1p = jnp.zeros((in_features + n_heads, hh), jnp.float32)
    w1p = w1p.at[:in_features, :].set(jnp.concatenate(Ws, axis=1))
    for h in range(n_heads):
        w1p = w1p.at[in_features + h, h * hidden:(h + 1) * hidden].set(a2s[h])

    # Buffer 2 (p2): cols [0:H] = block-diagonal a1 columns; cols [H:H+T] hold
    # W_out (rows 0:HH), a1_out (row HH) and a2_out (row HH+1).
    p2 = jnp.zeros((hh + 2, n_heads + timestep_max), jnp.float32)
    for h in range(n_heads):
        p2 = p2.at[h * hidden:(h + 1) * hidden, h].set(a1s[h])
    p2 = p2.at[:hh, n_heads:].set(w_out)
    p2 = p2.at[hh, n_heads:].set(a_out[:timestep_max, 0])
    p2 = p2.at[hh + 1, n_heads:].set(a_out[timestep_max:, 0])
    return w1p, p2


# ----------------------------------------------------------------------------
# Full Model forward: no host-side glue, everything happens in the kernel.
# ----------------------------------------------------------------------------
@jax.jit
def model_forward(x, adj, adj_hat, w1p, p2):
    # adj / adj_hat are accepted but unused: the PyTorch Model ignores them and
    # uses its internally built self.adj_mat, reproduced in-kernel via iota.
    del adj, adj_hat
    # TODO(synk): nn.Dropout(0.1) on the flattened inputs is identity (eval mode).
    return fused_gat_forward(x, w1p, p2)


if __name__ == "__main__":
    # small configs
    num_nodes = 8
    num_node_features = 4
    timestep_max = 8
    hidden_channels = 32
    n_heads = 2
    in_features = num_node_features * timestep_max

    key = jax.random.PRNGKey(0)
    key, kx = jax.random.split(key)
    x = jax.random.normal(kx, (1, timestep_max, num_nodes, num_node_features),
                          dtype=jnp.float32)
    assert x.shape[0] == 1, "Batch size should be 1"

    # adj / adj_hat arguments are accepted but unused by the forward pass
    adj = jnp.ones((num_nodes, num_nodes), jnp.float32) - jnp.eye(
        num_nodes, dtype=jnp.float32)
    adj_hat = adj

    w1p, p2 = init_packed_params(key, in_features, hidden_channels, n_heads,
                                 timestep_max)

    out = model_forward(x, adj, adj_hat, w1p, p2)
    out = jax.block_until_ready(out)
    assert out.shape == (num_nodes, timestep_max)
    print("KERNEL_OK")
</pallas_src>

<mosaic_0001>
module attributes {stable_mosaic.version = 11 : i64} {
  func.func @_fused_gat_kernel(%arg0: memref<1x8x8x4xf32, #tpu.memory_space<vmem>>, %arg1: memref<34x64xf32, #tpu.memory_space<vmem>>, %arg2: memref<66x10xf32, #tpu.memory_space<vmem>>, %arg3: memref<8x8xf32, #tpu.memory_space<vmem>>) attributes {dimension_semantics = [], scalar_prefetch = 0 : i64, scratch_operands = 0 : i64, tpu.core_type = #tpu.core_type<tc>} {
    %c0 = arith.constant 0 : index
    %c0_0 = arith.constant 0 : index
    %c0_1 = arith.constant 0 : index
    %c0_2 = arith.constant 0 : index
    %0 = vector.load %arg0[%c0, %c0_0, %c0_1, %c0_2] : memref<1x8x8x4xf32, #tpu.memory_space<vmem>>, vector<1x1x8x4xf32>
    %1 = vector.shape_cast %0 : vector<1x1x8x4xf32> to vector<8x4xf32>
    %c0_3 = arith.constant 0 : index
    %c0_4 = arith.constant 0 : index
    %2 = vector.load %arg1[%c0_3, %c0_4] : memref<34x64xf32, #tpu.memory_space<vmem>>, vector<4x64xf32>
    %cst = arith.constant dense<0.000000e+00> : vector<8x64xf32>
    %3 = tpu.matmul %1, %2, %cst {dimension_numbers = #tpu.dot_dimension_numbers<[1], [0], [0], [1], [0, 0, 1, 1], [], []>} : vector<8x4xf32>, vector<4x64xf32>, vector<8x64xf32> -> vector<8x64xf32>
    %c0_5 = arith.constant 0 : index
    %c1 = arith.constant 1 : index
    %c0_6 = arith.constant 0 : index
    %c0_7 = arith.constant 0 : index
    %4 = vector.load %arg0[%c0_5, %c1, %c0_6, %c0_7] : memref<1x8x8x4xf32, #tpu.memory_space<vmem>>, vector<1x1x8x4xf32>
    %5 = vector.shape_cast %4 : vector<1x1x8x4xf32> to vector<8x4xf32>
    %c4 = arith.constant 4 : index
    %c0_8 = arith.constant 0 : index
    %6 = vector.load %arg1[%c4, %c0_8] : memref<34x64xf32, #tpu.memory_space<vmem>>, vector<4x64xf32>
    %cst_9 = arith.constant dense<0.000000e+00> : vector<8x64xf32>
    %7 = tpu.matmul %5, %6, %cst_9 {dimension_numbers = #tpu.dot_dimension_numbers<[1], [0], [0], [1], [0, 0, 1, 1], [], []>} : vector<8x4xf32>, vector<4x64xf32>, vector<8x64xf32> -> vector<8x64xf32>
    %8 = arith.addf %3, %7 : vector<8x64xf32>
    %c0_10 = arith.constant 0 : index
    %c2 = arith.constant 2 : index
    %c0_11 = arith.constant 0 : index
    %c0_12 = arith.constant 0 : index
    %9 = vector.load %arg0[%c0_10, %c2, %c0_11, %c0_12] : memref<1x8x8x4xf32, #tpu.memory_space<vmem>>, vector<1x1x8x4xf32>
    %10 = vector.shape_cast %9 : vector<1x1x8x4xf32> to vector<8x4xf32>
    %c8 = arith.constant 8 : index
    %c0_13 = arith.constant 0 : index
    %11 = vector.load %arg1[%c8, %c0_13] : memref<34x64xf32, #tpu.memory_space<vmem>>, vector<4x64xf32>
    %cst_14 = arith.constant dense<0.000000e+00> : vector<8x64xf32>
    %12 = tpu.matmul %10, %11, %cst_14 {dimension_numbers = #tpu.dot_dimension_numbers<[1], [0], [0], [1], [0, 0, 1, 1], [], []>} : vector<8x4xf32>, vector<4x64xf32>, vector<8x64xf32> -> vector<8x64xf32>
    %13 = arith.addf %8, %12 : vector<8x64xf32>
    %c0_15 = arith.constant 0 : index
    %c3 = arith.constant 3 : index
    %c0_16 = arith.constant 0 : index
    %c0_17 = arith.constant 0 : index
    %14 = vector.load %arg0[%c0_15, %c3, %c0_16, %c0_17] : memref<1x8x8x4xf32, #tpu.memory_space<vmem>>, vector<1x1x8x4xf32>
    %15 = vector.shape_cast %14 : vector<1x1x8x4xf32> to vector<8x4xf32>
    %c12 = arith.constant 12 : index
    %c0_18 = arith.constant 0 : index
    %16 = vector.load %arg1[%c12, %c0_18] : memref<34x64xf32, #tpu.memory_space<vmem>>, vector<4x64xf32>
    %cst_19 = arith.constant dense<0.000000e+00> : vector<8x64xf32>
    %17 = tpu.matmul %15, %16, %cst_19 {dimension_numbers = #tpu.dot_dimension_numbers<[1], [0], [0], [1], [0, 0, 1, 1], [], []>} : vector<8x4xf32>, vector<4x64xf32>, vector<8x64xf32> -> vector<8x64xf32>
    %18 = arith.addf %13, %17 : vector<8x64xf32>
    %c0_20 = arith.constant 0 : index
    %c4_21 = arith.constant 4 : index
    %c0_22 = arith.constant 0 : index
    %c0_23 = arith.constant 0 : index
    %19 = vector.load %arg0[%c0_20, %c4_21, %c0_22, %c0_23] : memref<1x8x8x4xf32, #tpu.memory_space<vmem>>, vector<1x1x8x4xf32>
    %20 = vector.shape_cast %19 : vector<1x1x8x4xf32> to vector<8x4xf32>
    %c16 = arith.constant 16 : index
    %c0_24 = arith.constant 0 : index
    %21 = vector.load %arg1[%c16, %c0_24] : memref<34x64xf32, #tpu.memory_space<vmem>>, vector<4x64xf32>
    %cst_25 = arith.constant dense<0.000000e+00> : vector<8x64xf32>
    %22 = tpu.matmul %20, %21, %cst_25 {dimension_numbers = #tpu.dot_dimension_numbers<[1], [0], [0], [1], [0, 0, 1, 1], [], []>} : vector<8x4xf32>, vector<4x64xf32>, vector<8x64xf32> -> vector<8x64xf32>
    %23 = arith.addf %18, %22 : vector<8x64xf32>
    %c0_26 = arith.constant 0 : index
    %c5 = arith.constant 5 : index
    %c0_27 = arith.constant 0 : index
    %c0_28 = arith.constant 0 : index
    %24 = vector.load %arg0[%c0_26, %c5, %c0_27, %c0_28] : memref<1x8x8x4xf32, #tpu.memory_space<vmem>>, vector<1x1x8x4xf32>
    %25 = vector.shape_cast %24 : vector<1x1x8x4xf32> to vector<8x4xf32>
    %c20 = arith.constant 20 : index
    %c0_29 = arith.constant 0 : index
    %26 = vector.load %arg1[%c20, %c0_29] : memref<34x64xf32, #tpu.memory_space<vmem>>, vector<4x64xf32>
    %cst_30 = arith.constant dense<0.000000e+00> : vector<8x64xf32>
    %27 = tpu.matmul %25, %26, %cst_30 {dimension_numbers = #tpu.dot_dimension_numbers<[1], [0], [0], [1], [0, 0, 1, 1], [], []>} : vector<8x4xf32>, vector<4x64xf32>, vector<8x64xf32> -> vector<8x64xf32>
    %28 = arith.addf %23, %27 : vector<8x64xf32>
    %c0_31 = arith.constant 0 : index
    %c6 = arith.constant 6 : index
    %c0_32 = arith.constant 0 : index
    %c0_33 = arith.constant 0 : index
    %29 = vector.load %arg0[%c0_31, %c6, %c0_32, %c0_33] : memref<1x8x8x4xf32, #tpu.memory_space<vmem>>, vector<1x1x8x4xf32>
    %30 = vector.shape_cast %29 : vector<1x1x8x4xf32> to vector<8x4xf32>
    %c24 = arith.constant 24 : index
    %c0_34 = arith.constant 0 : index
    %31 = vector.load %arg1[%c24, %c0_34] : memref<34x64xf32, #tpu.memory_space<vmem>>, vector<4x64xf32>
    %cst_35 = arith.constant dense<0.000000e+00> : vector<8x64xf32>
    %32 = tpu.matmul %30, %31, %cst_35 {dimension_numbers = #tpu.dot_dimension_numbers<[1], [0], [0], [1], [0, 0, 1, 1], [], []>} : vector<8x4xf32>, vector<4x64xf32>, vector<8x64xf32> -> vector<8x64xf32>
    %33 = arith.addf %28, %32 : vector<8x64xf32>
    %c0_36 = arith.constant 0 : index
    %c7 = arith.constant 7 : index
    %c0_37 = arith.constant 0 : index
    %c0_38 = arith.constant 0 : index
    %34 = vector.load %arg0[%c0_36, %c7, %c0_37, %c0_38] : memref<1x8x8x4xf32, #tpu.memory_space<vmem>>, vector<1x1x8x4xf32>
    %35 = vector.shape_cast %34 : vector<1x1x8x4xf32> to vector<8x4xf32>
    %c28 = arith.constant 28 : index
    %c0_39 = arith.constant 0 : index
    %36 = vector.load %arg1[%c28, %c0_39] : memref<34x64xf32, #tpu.memory_space<vmem>>, vector<4x64xf32>
    %cst_40 = arith.constant dense<0.000000e+00> : vector<8x64xf32>
    %37 = tpu.matmul %35, %36, %cst_40 {dimension_numbers = #tpu.dot_dimension_numbers<[1], [0], [0], [1], [0, 0, 1, 1], [], []>} : vector<8x4xf32>, vector<4x64xf32>, vector<8x64xf32> -> vector<8x64xf32>
    %38 = arith.addf %33, %37 : vector<8x64xf32>
    %c0_41 = arith.constant 0 : index
    %c0_42 = arith.constant 0 : index
    %39 = vector.load %arg2[%c0_41, %c0_42] : memref<66x10xf32, #tpu.memory_space<vmem>>, vector<64x2xf32>
    %c32 = arith.constant 32 : index
    %c0_43 = arith.constant 0 : index
    %40 = vector.load %arg1[%c32, %c0_43] : memref<34x64xf32, #tpu.memory_space<vmem>>, vector<2x64xf32>
    %cst_44 = arith.constant dense<0.000000e+00> : vector<8x2xf32>
    %41 = tpu.matmul %38, %39, %cst_44 {dimension_numbers = #tpu.dot_dimension_numbers<[1], [0], [0], [1], [0, 0, 1, 1], [], []>} : vector<8x64xf32>, vector<64x2xf32>, vector<8x2xf32> -> vector<8x2xf32>
    %cst_45 = arith.constant dense<0.000000e+00> : vector<2x8xf32>
    %42 = tpu.matmul %40, %38, %cst_45 {dimension_numbers = #tpu.dot_dimension_numbers<[1], [1], [0], [0], [0, 0, 1, 0], [], []>} : vector<2x64xf32>, vector<8x64xf32>, vector<2x8xf32> -> vector<2x8xf32>
    %43 = tpu.iota {dimensions = array<i32: 0>} : vector<8x8xi32>
    %44 = tpu.iota {dimensions = array<i32: 1>} : vector<8x8xi32>
    %45 = arith.cmpi ne, %43, %44 : vector<8x8xi32>
    %46 = vector.extract_strided_slice %41 {offsets = [0, 0], sizes = [8, 1], strides = [1, 1]} : vector<8x2xf32> to vector<8x1xf32>
    %47 = vector.extract_strided_slice %42 {offsets = [0, 0], sizes = [1, 8], strides = [1, 1]} : vector<2x8xf32> to vector<1x8xf32>
    %48 = vector.extract_strided_slice %38 {offsets = [0, 0], sizes = [8, 32], strides = [1, 1]} : vector<8x64xf32> to vector<8x32xf32>
    %49 = vector.broadcast %46 : vector<8x1xf32> to vector<8x8xf32>
    %50 = vector.broadcast %47 : vector<1x8xf32> to vector<8x8xf32>
    %51 = arith.addf %49, %50 : vector<8x8xf32>
    %cst_46 = arith.constant 0.000000e+00 : f32
    %52 = vector.broadcast %cst_46 : f32 to vector<8x8xf32>
    %53 = arith.cmpf ogt, %51, %52 : vector<8x8xf32>
    %cst_47 = arith.constant 0.00999999977 : f32
    %54 = vector.broadcast %cst_47 : f32 to vector<8x8xf32>
    %55 = arith.mulf %54, %51 : vector<8x8xf32>
    %56 = arith.select %53, %51, %55 : vector<8x8xi1>, vector<8x8xf32>
    %cst_48 = arith.constant -9.000000e+15 : f32
    %57 = vector.broadcast %cst_48 : f32 to vector<8x8xf32>
    %58 = arith.select %45, %56, %57 : vector<8x8xi1>, vector<8x8xf32>
    %cst_49 = arith.constant dense<0xFF800000> : vector<8xf32>
    %59 = vector.multi_reduction <maximumf>, %58, %cst_49 [1] : vector<8x8xf32> to vector<8xf32>
    %60 = vector.shape_cast %59 : vector<8xf32> to vector<8x1xf32>
    %61 = vector.broadcast %60 : vector<8x1xf32> to vector<8x8xf32>
    %62 = arith.subf %58, %61 : vector<8x8xf32>
    %63 = math.exp %62 : vector<8x8xf32>
    %cst_50 = arith.constant dense<0.000000e+00> : vector<8xf32>
    %64 = vector.multi_reduction <add>, %63, %cst_50 [1] : vector<8x8xf32> to vector<8xf32>
    %65 = vector.shape_cast %64 : vector<8xf32> to vector<8x1xf32>
    %66 = tpu.reciprocal %65 {approx = true} : vector<8x1xf32> -> vector<8x1xf32>
    %67 = vector.broadcast %66 : vector<8x1xf32> to vector<8x8xf32>
    %68 = arith.mulf %63, %67 : vector<8x8xf32>
    %cst_51 = arith.constant dense<0.000000e+00> : vector<8x32xf32>
    %69 = tpu.matmul %68, %48, %cst_51 {dimension_numbers = #tpu.dot_dimension_numbers<[1], [0], [0], [1], [0, 0, 1, 1], [], []>} : vector<8x8xf32>, vector<8x32xf32>, vector<8x32xf32> -> vector<8x32xf32>
    %cst_52 = arith.constant 0.000000e+00 : f32
    %70 = vector.broadcast %cst_52 : f32 to vector<8x32xf32>
    %71 = arith.cmpf ogt, %69, %70 : vector<8x32xf32>
    %72 = math.exp %69 : vector<8x32xf32>
    %cst_53 = arith.constant 1.000000e+00 : f32
    %73 = vector.broadcast %cst_53 : f32 to vector<8x32xf32>
    %74 = arith.subf %72, %73 : vector<8x32xf32>
    %75 = arith.select %71, %69, %74 : vector<8x32xi1>, vector<8x32xf32>
    %76 = vector.extract_strided_slice %41 {offsets = [0, 1], sizes = [8, 1], strides = [1, 1]} : vector<8x2xf32> to vector<8x1xf32>
    %77 = vector.extract_strided_slice %42 {offsets = [1, 0], sizes = [1, 8], strides = [1, 1]} : vector<2x8xf32> to vector<1x8xf32>
    %78 = vector.extract_strided_slice %38 {offsets = [0, 32], sizes = [8, 32], strides = [1, 1]} : vector<8x64xf32> to vector<8x32xf32>
    %79 = vector.broadcast %76 : vector<8x1xf32> to vector<8x8xf32>
    %80 = vector.broadcast %77 : vector<1x8xf32> to vector<8x8xf32>
    %81 = arith.addf %79, %80 : vector<8x8xf32>
    %cst_54 = arith.constant 0.000000e+00 : f32
    %82 = vector.broadcast %cst_54 : f32 to vector<8x8xf32>
    %83 = arith.cmpf ogt, %81, %82 : vector<8x8xf32>
    %cst_55 = arith.constant 0.00999999977 : f32
    %84 = vector.broadcast %cst_55 : f32 to vector<8x8xf32>
    %85 = arith.mulf %84, %81 : vector<8x8xf32>
    %86 = arith.select %83, %81, %85 : vector<8x8xi1>, vector<8x8xf32>
    %cst_56 = arith.constant -9.000000e+15 : f32
    %87 = vector.broadcast %cst_56 : f32 to vector<8x8xf32>
    %88 = arith.select %45, %86, %87 : vector<8x8xi1>, vector<8x8xf32>
    %cst_57 = arith.constant dense<0xFF800000> : vector<8xf32>
    %89 = vector.multi_reduction <maximumf>, %88, %cst_57 [1] : vector<8x8xf32> to vector<8xf32>
    %90 = vector.shape_cast %89 : vector<8xf32> to vector<8x1xf32>
    %91 = vector.broadcast %90 : vector<8x1xf32> to vector<8x8xf32>
    %92 = arith.subf %88, %91 : vector<8x8xf32>
    %93 = math.exp %92 : vector<8x8xf32>
    %cst_58 = arith.constant dense<0.000000e+00> : vector<8xf32>
    %94 = vector.multi_reduction <add>, %93, %cst_58 [1] : vector<8x8xf32> to vector<8xf32>
    %95 = vector.shape_cast %94 : vector<8xf32> to vector<8x1xf32>
    %96 = tpu.reciprocal %95 {approx = true} : vector<8x1xf32> -> vector<8x1xf32>
    %97 = vector.broadcast %96 : vector<8x1xf32> to vector<8x8xf32>
    %98 = arith.mulf %93, %97 : vector<8x8xf32>
    %cst_59 = arith.constant dense<0.000000e+00> : vector<8x32xf32>
    %99 = tpu.matmul %98, %78, %cst_59 {dimension_numbers = #tpu.dot_dimension_numbers<[1], [0], [0], [1], [0, 0, 1, 1], [], []>} : vector<8x8xf32>, vector<8x32xf32>, vector<8x32xf32> -> vector<8x32xf32>
    %cst_60 = arith.constant 0.000000e+00 : f32
    %100 = vector.broadcast %cst_60 : f32 to vector<8x32xf32>
    %101 = arith.cmpf ogt, %99, %100 : vector<8x32xf32>
    %102 = math.exp %99 : vector<8x32xf32>
    %cst_61 = arith.constant 1.000000e+00 : f32
    %103 = vector.broadcast %cst_61 : f32 to vector<8x32xf32>
    %104 = arith.subf %102, %103 : vector<8x32xf32>
    %105 = arith.select %101, %99, %104 : vector<8x32xi1>, vector<8x32xf32>
    %106 = tpu.concatenate %75, %105 in 1 : vector<8x32xf32>, vector<8x32xf32> -> vector<8x64xf32>
    %c0_62 = arith.constant 0 : index
    %c2_63 = arith.constant 2 : index
    %107 = vector.load %arg2[%c0_62, %c2_63] : memref<66x10xf32, #tpu.memory_space<vmem>>, vector<64x8xf32>
    %c64 = arith.constant 64 : index
    %c2_64 = arith.constant 2 : index
    %108 = vector.load %arg2[%c64, %c2_64] : memref<66x10xf32, #tpu.memory_space<vmem>>, vector<1x8xf32>
    %c65 = arith.constant 65 : index
    %c2_65 = arith.constant 2 : index
    %109 = vector.load %arg2[%c65, %c2_65] : memref<66x10xf32, #tpu.memory_space<vmem>>, vector<1x8xf32>
    %cst_66 = arith.constant dense<0.000000e+00> : vector<8x8xf32>
    %110 = tpu.matmul %106, %107, %cst_66 {dimension_numbers = #tpu.dot_dimension_numbers<[1], [0], [0], [1], [0, 0, 1, 1], [], []>} : vector<8x64xf32>, vector<64x8xf32>, vector<8x8xf32> -> vector<8x8xf32>
    %cst_67 = arith.constant dense<0.000000e+00> : vector<8x1xf32>
    %111 = tpu.matmul %110, %108, %cst_67 {dimension_numbers = #tpu.dot_dimension_numbers<[1], [1], [0], [0], [0, 0, 1, 0], [], []>} : vector<8x8xf32>, vector<1x8xf32>, vector<8x1xf32> -> vector<8x1xf32>
    %cst_68 = arith.constant dense<0.000000e+00> : vector<1x8xf32>
    %112 = tpu.matmul %109, %110, %cst_68 {dimension_numbers = #tpu.dot_dimension_numbers<[1], [1], [0], [0], [0, 0, 1, 0], [], []>} : vector<1x8xf32>, vector<8x8xf32>, vector<1x8xf32> -> vector<1x8xf32>
    %113 = vector.broadcast %111 : vector<8x1xf32> to vector<8x8xf32>
    %114 = vector.broadcast %112 : vector<1x8xf32> to vector<8x8xf32>
    %115 = arith.addf %113, %114 : vector<8x8xf32>
    %cst_69 = arith.constant 0.000000e+00 : f32
    %116 = vector.broadcast %cst_69 : f32 to vector<8x8xf32>
    %117 = arith.cmpf ogt, %115, %116 : vector<8x8xf32>
    %cst_70 = arith.constant 0.00999999977 : f32
    %118 = vector.broadcast %cst_70 : f32 to vector<8x8xf32>
    %119 = arith.mulf %118, %115 : vector<8x8xf32>
    %120 = arith.select %117, %115, %119 : vector<8x8xi1>, vector<8x8xf32>
    %cst_71 = arith.constant -9.000000e+15 : f32
    %121 = vector.broadcast %cst_71 : f32 to vector<8x8xf32>
    %122 = arith.select %45, %120, %121 : vector<8x8xi1>, vector<8x8xf32>
    %cst_72 = arith.constant dense<0xFF800000> : vector<8xf32>
    %123 = vector.multi_reduction <maximumf>, %122, %cst_72 [1] : vector<8x8xf32> to vector<8xf32>
    %124 = vector.shape_cast %123 : vector<8xf32> to vector<8x1xf32>
    %125 = vector.broadcast %124 : vector<8x1xf32> to vector<8x8xf32>
    %126 = arith.subf %122, %125 : vector<8x8xf32>
    %127 = math.exp %126 : vector<8x8xf32>
    %cst_73 = arith.constant dense<0.000000e+00> : vector<8xf32>
    %128 = vector.multi_reduction <add>, %127, %cst_73 [1] : vector<8x8xf32> to vector<8xf32>
    %129 = vector.shape_cast %128 : vector<8xf32> to vector<8x1xf32>
    %130 = tpu.reciprocal %129 {approx = true} : vector<8x1xf32> -> vector<8x1xf32>
    %131 = vector.broadcast %130 : vector<8x1xf32> to vector<8x8xf32>
    %132 = arith.mulf %127, %131 : vector<8x8xf32>
    %cst_74 = arith.constant dense<0.000000e+00> : vector<8x8xf32>
    %133 = tpu.matmul %132, %110, %cst_74 {dimension_numbers = #tpu.dot_dimension_numbers<[1], [0], [0], [1], [0, 0, 1, 1], [], []>} : vector<8x8xf32>, vector<8x8xf32>, vector<8x8xf32> -> vector<8x8xf32>
    %c0_75 = arith.constant 0 : index
    %c0_76 = arith.constant 0 : index
    %134 = vector.load %arg3[%c0_75, %c0_76] : memref<8x8xf32, #tpu.memory_space<vmem>>, vector<8x8xf32>
    tpu.vector_store %arg3[%c0_75, %c0_76], %133 {strides = array<i32>} : memref<8x8xf32, #tpu.memory_space<vmem>>, vector<8x8xf32>,
    return
  }
}

</mosaic_0001>

<llo_original>
// kernel: model_forward.1
$region0: #{model_forward.1}
  #allocation0 [shape = 'u32[]', space=smem, size = 0x4, offset = 0x4, fixed_abs, tag = 'smem constant byte address 0x4 - core index']
  #allocation1 [shape = 'u32[144,128]{1,0:T(1,128)}', space=vmem, size = 0x12000, scoped, tag = 'internal scratch']
  %s0 = inlined_call_operand.vmem [shape: f32[1,8,8,4], index: 0, kind: input, shape index: {}]
  %s1 = inlined_call_operand.vmem [shape: f32[34,64], index: 1, kind: input, shape index: {}]
  %s2 = inlined_call_operand.vmem [shape: f32[66,10], index: 2, kind: input, shape index: {}]
  %s3 = inlined_call_operand.hbm [shape: f32[8,8], index: 3, kind: output, shape index: {}]
  %s4 = sld [smem:[#allocation0]]
  $region22: #{model_forward.1} parent=0
    _
  %s6 = ssub.s32 1, %s4
  %s7 = scalar_select 0, %s6, %s4
  $region1: #{model_forward.1} parent=0
    #allocation2 [shape = 'u8[4096]{0}', space=vmem, size = 0x1000, scoped, tag = 'output window, operand 0, single buffered']
    #allocation3 [shape = 's32[1]{0}', space=sflag, size = 0x4, scoped, tag = 'scoped memory for model_forward.1']
    %8 = vsyncpa [#allocation3], 0
    // Predicated region
    $region2: #{model_forward.1} parent=1 // pred_check
      _
    $region3: #{model_forward.1} parent=1 // pred_check_branch
      %10 = sbr.rel (0) target = $region5
    $region4: #{model_forward.1} parent=1 // pred_region
      _
    $region5: #{model_forward.1} parent=1 // pred_fallthru
      _
    // Predicated region
    $region6: #{model_forward.1} parent=1 // pred_check
      _
    $region7: #{model_forward.1} parent=1 // pred_check_branch
      %12 = sbr.rel (0) target = $region9
    $region8: #{model_forward.1} parent=1 // pred_region
      _
    $region9: #{model_forward.1} parent=1 // pred_fallthru
      _
    // Predicated region
    $region10: #{model_forward.1} parent=1 // pred_check
      _
    $region11: #{model_forward.1} parent=1 // pred_check_branch
      %14 = sbr.rel (0) target = $region13
    $region12: #{model_forward.1} parent=1 // pred_region
      _
    $region13: #{model_forward.1} parent=1 // pred_fallthru
      _
    %v15 = vld [vmem:[%s0] sm:$0xff]
    %v16 = vld [vmem:[%s1] sm:$0xf]
    %s17 = scalar_lea.vmem %s0, 8
    %v18 = vld [vmem:[%s17] sm:$0xff]
    %v19 = vld [vmem:[%s1 + $0x4] sm:$0xf]
    %vm20 = vcmask 31744
    %v22 = vsel %vm20, %v18, 0
    %vm24 = vcmask 1043456
    %v26 = vsel %vm24, %v19, 0
    %28 = vmatprep.subr.mxu0 0.0
    %29 = vmatpush1.msra.mxu0 0.0
    %30 = vmatprep.subr.mxu0 0.0
    %31 = vmatpush1.msra.mxu0 0.0
    %32 = vmatprep.subr.mxu0 0.0
    %33 = vmatpush1.msra.mxu0 0.0
    %34 = vmatprep.subr.mxu0 0.0
    %35 = vmatpush1.msra.mxu0 0.0
    %36 = vmatprep.subr.mxu0 0.0
    %37 = vmatpush1.msra.mxu0 0.0
    %38 = vmatprep.subr.mxu0 0.0
    %39 = vmatpush1.msra.mxu0 0.0
    %40 = vmatprep.subr.mxu0 0.0
    %41 = vmatpush1.msra.mxu0 0.0
    %42 = vmatprep.subr.mxu0 0.0
    %43 = vmatpush1.msra.mxu0 0.0
    %44 = vmatprep.subr.mxu0 0.0
    %45 = vmatpush1.msra.mxu0 0.0
    %46 = vmatprep.subr.mxu0 0.0
    %47 = vmatpush1.msra.mxu0 0.0
    %48 = vmatprep.subr.mxu0 0.0
    %49 = vmatpush1.msra.mxu0 0.0
    %50 = vmatprep.subr.mxu0 0.0
    %51 = vmatpush1.msra.mxu0 0.0
    %52 = vmatprep.subr.mxu0 0.0
    %53 = vmatpush1.msra.mxu0 0.0
    %54 = vmatprep.subr.mxu0 0.0
    %55 = vmatpush1.msra.mxu0 0.0
    %56 = vmatprep.subr.mxu0 0.0
    %57 = vmatpush1.msra.mxu0 0.0
    %58 = vmatprep.subr.mxu0 0.0
    %59 = vmatpush1.msra.mxu0 %v26
    %60 = vmatprep.subr.mxu0 0.0
    %61 = vmatpush2.msra.mxu0 0.0
    %62 = vmatprep.subr.mxu0 0.0
    %63 = vmatpush2.msra.mxu0 0.0
    %64 = vmatprep.subr.mxu0 0.0
    %65 = vmatpush2.msra.mxu0 0.0
    %66 = vmatprep.subr.mxu0 0.0
    %67 = vmatpush2.msra.mxu0 0.0
    %68 = vmatprep.subr.mxu0 0.0
    %69 = vmatpush2.msra.mxu0 0.0
    %70 = vmatprep.subr.mxu0 0.0
    %71 = vmatpush2.msra.mxu0 0.0
    %72 = vmatprep.subr.mxu0 0.0
    %73 = vmatpush2.msra.mxu0 0.0
    %74 = vmatprep.subr.mxu0 0.0
    %75 = vmatpush2.msra.mxu0 0.0
    %76 = vmatprep.subr.mxu0 0.0
    %77 = vmatpush2.msra.mxu0 0.0
    %78 = vmatprep.subr.mxu0 0.0
    %79 = vmatpush2.msra.mxu0 0.0
    %80 = vmatprep.subr.mxu0 0.0
    %81 = vmatpush2.msra.mxu0 0.0
    %82 = vmatprep.subr.mxu0 0.0
    %83 = vmatpush2.msra.mxu0 0.0
    %84 = vmatprep.subr.mxu0 0.0
    %85 = vmatpush2.msra.mxu0 0.0
    %86 = vmatprep.subr.mxu0 0.0
    %87 = vmatpush2.msra.mxu0 0.0
    %88 = vmatprep.subr.mxu0 0.0
    %89 = vmatpush2.msra.mxu0 0.0
    %90 = vmatprep.subr.mxu0 0.0
    %91 = vmatpush2.msra.mxu0 0.0
    %92 = vmatprep.mubr.f32.mxu0 0.0
    %93 = vmatmul.mubr.f32.gmra.mxu0 %v22
    %v94 = vpop.f32.mrf.mxu0
    %v95 = vadd.f32 0.0, %v94
    %v96 = vpop.f32.mrf.mxu0
    %97 = vdwg.mxu0
    %v99 = vsel %vm20, %v15, 0
    %v102 = vsel %vm24, %v16, 0
    %104 = vmatprep.subr.mxu0 0.0
    %105 = vmatpush1.msra.mxu0 0.0
    %106 = vmatprep.subr.mxu0 0.0
    %107 = vmatpush1.msra.mxu0 0.0
    %108 = vmatprep.subr.mxu0 0.0
    %109 = vmatpush1.msra.mxu0 0.0
    %110 = vmatprep.subr.mxu0 0.0
    %111 = vmatpush1.msra.mxu0 0.0
    %112 = vmatprep.subr.mxu0 0.0
    %113 = vmatpush1.msra.mxu0 0.0
    %114 = vmatprep.subr.mxu0 0.0
    %115 = vmatpush1.msra.mxu0 0.0
    %116 = vmatprep.subr.mxu0 0.0
    %117 = vmatpush1.msra.mxu0 0.0
    %118 = vmatprep.subr.mxu0 0.0
    %119 = vmatpush1.msra.mxu0 0.0
    %120 = vmatprep.subr.mxu0 0.0
    %121 = vmatpush1.msra.mxu0 0.0
    %122 = vmatprep.subr.mxu0 0.0
    %123 = vmatpush1.msra.mxu0 0.0
    %124 = vmatprep.subr.mxu0 0.0
    %125 = vmatpush1.msra.mxu0 0.0
    %126 = vmatprep.subr.mxu0 0.0
    %127 = vmatpush1.msra.mxu0 0.0
    %128 = vmatprep.subr.mxu0 0.0
    %129 = vmatpush1.msra.mxu0 0.0
    %130 = vmatprep.subr.mxu0 0.0
    %131 = vmatpush1.msra.mxu0 0.0
    %132 = vmatprep.subr.mxu0 0.0
    %133 = vmatpush1.msra.mxu0 0.0
    %134 = vmatprep.subr.mxu0 0.0
    %135 = vmatpush1.msra.mxu0 %v102
    %136 = vmatprep.subr.mxu0 0.0
    %137 = vmatpush2.msra.mxu0 0.0
    %138 = vmatprep.subr.mxu0 0.0
    %139 = vmatpush2.msra.mxu0 0.0
    %140 = vmatprep.subr.mxu0 0.0
    %141 = vmatpush2.msra.mxu0 0.0
    %142 = vmatprep.subr.mxu0 0.0
    %143 = vmatpush2.msra.mxu0 0.0
    %144 = vmatprep.subr.mxu0 0.0
    %145 = vmatpush2.msra.mxu0 0.0
    %146 = vmatprep.subr.mxu0 0.0
    %147 = vmatpush2.msra.mxu0 0.0
    %148 = vmatprep.subr.mxu0 0.0
    %149 = vmatpush2.msra.mxu0 0.0
    %150 = vmatprep.subr.mxu0 0.0
    %151 = vmatpush2.msra.mxu0 0.0
    %152 = vmatprep.subr.mxu0 0.0
    %153 = vmatpush2.msra.mxu0 0.0
    %154 = vmatprep.subr.mxu0 0.0
    %155 = vmatpush2.msra.mxu0 0.0
    %156 = vmatprep.subr.mxu0 0.0
    %157 = vmatpush2.msra.mxu0 0.0
    %158 = vmatprep.subr.mxu0 0.0
    %159 = vmatpush2.msra.mxu0 0.0
    %160 = vmatprep.subr.mxu0 0.0
    %161 = vmatpush2.msra.mxu0 0.0
    %162 = vmatprep.subr.mxu0 0.0
    %163 = vmatpush2.msra.mxu0 0.0
    %164 = vmatprep.subr.mxu0 0.0
    %165 = vmatpush2.msra.mxu0 0.0
    %166 = vmatprep.subr.mxu0 0.0
    %167 = vmatpush2.msra.mxu0 0.0
    %168 = vmatprep.mubr.f32.mxu0 0.0
    %169 = vmatmul.mubr.f32.gmra.mxu0 %v99
    %v170 = vpop.f32.mrf.mxu0
    %v171 = vadd.f32 %v95, %v170
    %v172 = vpop.f32.mrf.mxu0
    %173 = vdwg.mxu0
    %s174 = scalar_lea.vmem %s0, 16
    %v175 = vld [vmem:[%s174] sm:$0xff]
    %v176 = vld [vmem:[%s1 + $0x8] sm:$0xf]
    %v178 = vsel %vm20, %v175, 0
    %v181 = vsel %vm24, %v176, 0
    %183 = vmatprep.subr.mxu0 0.0
    %184 = vmatpush1.msra.mxu0 0.0
    %185 = vmatprep.subr.mxu0 0.0
    %186 = vmatpush1.msra.mxu0 0.0
    %187 = vmatprep.subr.mxu0 0.0
    %188 = vmatpush1.msra.mxu0 0.0
    %189 = vmatprep.subr.mxu0 0.0
    %190 = vmatpush1.msra.mxu0 0.0
    %191 = vmatprep.subr.mxu0 0.0
    %192 = vmatpush1.msra.mxu0 0.0
    %193 = vmatprep.subr.mxu0 0.0
    %194 = vmatpush1.msra.mxu0 0.0
    %195 = vmatprep.subr.mxu0 0.0
    %196 = vmatpush1.msra.mxu0 0.0
    %197 = vmatprep.subr.mxu0 0.0
    %198 = vmatpush1.msra.mxu0 0.0
    %199 = vmatprep.subr.mxu0 0.0
    %200 = vmatpush1.msra.mxu0 0.0
    %201 = vmatprep.subr.mxu0 0.0
    %202 = vmatpush1.msra.mxu0 0.0
    %203 = vmatprep.subr.mxu0 0.0
    %204 = vmatpush1.msra.mxu0 0.0
    %205 = vmatprep.subr.mxu0 0.0
    %206 = vmatpush1.msra.mxu0 0.0
    %207 = vmatprep.subr.mxu0 0.0
    %208 = vmatpush1.msra.mxu0 0.0
    %209 = vmatprep.subr.mxu0 0.0
    %210 = vmatpush1.msra.mxu0 0.0
    %211 = vmatprep.subr.mxu0 0.0
    %212 = vmatpush1.msra.mxu0 0.0
    %213 = vmatprep.subr.mxu0 0.0
    %214 = vmatpush1.msra.mxu0 %v181
    %215 = vmatprep.subr.mxu0 0.0
    %216 = vmatpush2.msra.mxu0 0.0
    %217 = vmatprep.subr.mxu0 0.0
    %218 = vmatpush2.msra.mxu0 0.0
    %219 = vmatprep.subr.mxu0 0.0
    %220 = vmatpush2.msra.mxu0 0.0
    %221 = vmatprep.subr.mxu0 0.0
    %222 = vmatpush2.msra.mxu0 0.0
    %223 = vmatprep.subr.mxu0 0.0
    %224 = vmatpush2.msra.mxu0 0.0
    %225 = vmatprep.subr.mxu0 0.0
    %226 = vmatpush2.msra.mxu0 0.0
    %227 = vmatprep.subr.mxu0 0.0
    %228 = vmatpush2.msra.mxu0 0.0
    %229 = vmatprep.subr.mxu0 0.0
    %230 = vmatpush2.msra.mxu0 0.0
    %231 = vmatprep.subr.mxu0 0.0
    %232 = vmatpush2.msra.mxu0 0.0
    %233 = vmatprep.subr.mxu0 0.0
    %234 = vmatpush2.msra.mxu0 0.0
    %235 = vmatprep.subr.mxu0 0.0
    %236 = vmatpush2.msra.mxu0 0.0
    %237 = vmatprep.subr.mxu0 0.0
    %238 = vmatpush2.msra.mxu0 0.0
    %239 = vmatprep.subr.mxu0 0.0
    %240 = vmatpush2.msra.mxu0 0.0
    %241 = vmatprep.subr.mxu0 0.0
    %242 = vmatpush2.msra.mxu0 0.0
    %243 = vmatprep.subr.mxu0 0.0
    %244 = vmatpush2.msra.mxu0 0.0
    %245 = vmatprep.subr.mxu0 0.0
    %246 = vmatpush2.msra.mxu0 0.0
    %247 = vmatprep.mubr.f32.mxu0 0.0
    %248 = vmatmul.mubr.f32.gmra.mxu0 %v178
    %v249 = vpop.f32.mrf.mxu0
    %v250 = vadd.f32 0.0, %v249
    %v251 = vpop.f32.mrf.mxu0
    %252 = vdwg.mxu0
    %v253 = vadd.f32 %v171, %v250
    %s254 = scalar_lea.vmem %s0, 24
    %v255 = vld [vmem:[%s254] sm:$0xff]
    %v256 = vld [vmem:[%s1 + $0xc] sm:$0xf]
    %v258 = vsel %vm20, %v255, 0
    %v261 = vsel %vm24, %v256, 0
    %263 = vmatprep.subr.mxu0 0.0
    %264 = vmatpush1.msra.mxu0 0.0
    %265 = vmatprep.subr.mxu0 0.0
    %266 = vmatpush1.msra.mxu0 0.0
    %267 = vmatprep.subr.mxu0 0.0
    %268 = vmatpush1.msra.mxu0 0.0
    %269 = vmatprep.subr.mxu0 0.0
    %270 = vmatpush1.msra.mxu0 0.0
    %271 = vmatprep.subr.mxu0 0.0
    %272 = vmatpush1.msra.mxu0 0.0
    %273 = vmatprep.subr.mxu0 0.0
    %274 = vmatpush1.msra.mxu0 0.0
    %275 = vmatprep.subr.mxu0 0.0
    %276 = vmatpush1.msra.mxu0 0.0
    %277 = vmatprep.subr.mxu0 0.0
    %278 = vmatpush1.msra.mxu0 0.0
    %279 = vmatprep.subr.mxu0 0.0
    %280 = vmatpush1.msra.mxu0 0.0
    %281 = vmatprep.subr.mxu0 0.0
    %282 = vmatpush1.msra.mxu0 0.0
    %283 = vmatprep.subr.mxu0 0.0
    %284 = vmatpush1.msra.mxu0 0.0
    %285 = vmatprep.subr.mxu0 0.0
    %286 = vmatpush1.msra.mxu0 0.0
    %287 = vmatprep.subr.mxu0 0.0
    %288 = vmatpush1.msra.mxu0 0.0
    %289 = vmatprep.subr.mxu0 0.0
    %290 = vmatpush1.msra.mxu0 0.0
    %291 = vmatprep.subr.mxu0 0.0
    %292 = vmatpush1.msra.mxu0 0.0
    %293 = vmatprep.subr.mxu0 0.0
    %294 = vmatpush1.msra.mxu0 %v261
    %295 = vmatprep.subr.mxu0 0.0
    %296 = vmatpush2.msra.mxu0 0.0
    %297 = vmatprep.subr.mxu0 0.0
    %298 = vmatpush2.msra.mxu0 0.0
    %299 = vmatprep.subr.mxu0 0.0
    %300 = vmatpush2.msra.mxu0 0.0
    %301 = vmatprep.subr.mxu0 0.0
    %302 = vmatpush2.msra.mxu0 0.0
    %303 = vmatprep.subr.mxu0 0.0
    %304 = vmatpush2.msra.mxu0 0.0
    %305 = vmatprep.subr.mxu0 0.0
    %306 = vmatpush2.msra.mxu0 0.0
    %307 = vmatprep.subr.mxu0 0.0
    %308 = vmatpush2.msra.mxu0 0.0
    %309 = vmatprep.subr.mxu0 0.0
    %310 = vmatpush2.msra.mxu0 0.0
    %311 = vmatprep.subr.mxu0 0.0
    %312 = vmatpush2.msra.mxu0 0.0
    %313 = vmatprep.subr.mxu0 0.0
    %314 = vmatpush2.msra.mxu0 0.0
    %315 = vmatprep.subr.mxu0 0.0
    %316 = vmatpush2.msra.mxu0 0.0
    %317 = vmatprep.subr.mxu0 0.0
    %318 = vmatpush2.msra.mxu0 0.0
    %319 = vmatprep.subr.mxu0 0.0
    %320 = vmatpush2.msra.mxu0 0.0
    %321 = vmatprep.subr.mxu0 0.0
    %322 = vmatpush2.msra.mxu0 0.0
    %323 = vmatprep.subr.mxu0 0.0
    %324 = vmatpush2.msra.mxu0 0.0
    %325 = vmatprep.subr.mxu0 0.0
    %326 = vmatpush2.msra.mxu0 0.0
    %327 = vmatprep.mubr.f32.mxu0 0.0
    %328 = vmatmul.mubr.f32.gmra.mxu0 %v258
    %v329 = vpop.f32.mrf.mxu0
    %v330 = vadd.f32 0.0, %v329
    %v331 = vpop.f32.mrf.mxu0
    %332 = vdwg.mxu0
    %v333 = vadd.f32 %v253, %v330
    %s334 = scalar_lea.vmem %s0, 32
    %v335 = vld [vmem:[%s334] sm:$0xff]
    %v336 = vld [vmem:[%s1 + $0x10] sm:$0xf]
    %v338 = vsel %vm20, %v335, 0
    %v341 = vsel %vm24, %v336, 0
    %343 = vmatprep.subr.mxu0 0.0
    %344 = vmatpush1.msra.mxu0 0.0
    %345 = vmatprep.subr.mxu0 0.0
    %346 = vmatpush1.msra.mxu0 0.0
    %347 = vmatprep.subr.mxu0 0.0
    %348 = vmatpush1.msra.mxu0 0.0
    %349 = vmatprep.subr.mxu0 0.0
    %350 = vmatpush1.msra.mxu0 0.0
    %351 = vmatprep.subr.mxu0 0.0
    %352 = vmatpush1.msra.mxu0 0.0
    %353 = vmatprep.subr.mxu0 0.0
    %354 = vmatpush1.msra.mxu0 0.0
    %355 = vmatprep.subr.mxu0 0.0
    %356 = vmatpush1.msra.mxu0 0.0
    %357 = vmatprep.subr.mxu0 0.0
    %358 = vmatpush1.msra.mxu0 0.0
    %359 = vmatprep.subr.mxu0 0.0
    %360 = vmatpush1.msra.mxu0 0.0
    %361 = vmatprep.subr.mxu0 0.0
    %362 = vmatpush1.msra.mxu0 0.0
    %363 = vmatprep.subr.mxu0 0.0
    %364 = vmatpush1.msra.mxu0 0.0
    %365 = vmatprep.subr.mxu0 0.0
    %366 = vmatpush1.msra.mxu0 0.0
    %367 = vmatprep.subr.mxu0 0.0
    %368 = vmatpush1.msra.mxu0 0.0
    %369 = vmatprep.subr.mxu0 0.0
    %370 = vmatpush1.msra.mxu0 0.0
    %371 = vmatprep.subr.mxu0 0.0
    %372 = vmatpush1.msra.mxu0 0.0
    %373 = vmatprep.subr.mxu0 0.0
    %374 = vmatpush1.msra.mxu0 %v341
    %375 = vmatprep.subr.mxu0 0.0
    %376 = vmatpush2.msra.mxu0 0.0
    %377 = vmatprep.subr.mxu0 0.0
    %378 = vmatpush2.msra.mxu0 0.0
    %379 = vmatprep.subr.mxu0 0.0
    %380 = vmatpush2.msra.mxu0 0.0
    %381 = vmatprep.subr.mxu0 0.0
    %382 = vmatpush2.msra.mxu0 0.0
    %383 = vmatprep.subr.mxu0 0.0
    %384 = vmatpush2.msra.mxu0 0.0
    %385 = vmatprep.subr.mxu0 0.0
    %386 = vmatpush2.msra.mxu0 0.0
    %387 = vmatprep.subr.mxu0 0.0
    %388 = vmatpush2.msra.mxu0 0.0
    %389 = vmatprep.subr.mxu0 0.0
    %390 = vmatpush2.msra.mxu0 0.0
    %391 = vmatprep.subr.mxu0 0.0
    %392 = vmatpush2.msra.mxu0 0.0
    %393 = vmatprep.subr.mxu0 0.0
    %394 = vmatpush2.msra.mxu0 0.0
    %395 = vmatprep.subr.mxu0 0.0
    %396 = vmatpush2.msra.mxu0 0.0
    %397 = vmatprep.subr.mxu0 0.0
    %398 = vmatpush2.msra.mxu0 0.0
    %399 = vmatprep.subr.mxu0 0.0
    %400 = vmatpush2.msra.mxu0 0.0
    %401 = vmatprep.subr.mxu0 0.0
    %402 = vmatpush2.msra.mxu0 0.0
    %403 = vmatprep.subr.mxu0 0.0
    %404 = vmatpush2.msra.mxu0 0.0
    %405 = vmatprep.subr.mxu0 0.0
    %406 = vmatpush2.msra.mxu0 0.0
    %407 = vmatprep.mubr.f32.mxu0 0.0
    %408 = vmatmul.mubr.f32.gmra.mxu0 %v338
    %v409 = vpop.f32.mrf.mxu0
    %v410 = vadd.f32 0.0, %v409
    %v411 = vpop.f32.mrf.mxu0
    %412 = vdwg.mxu0
    %v413 = vadd.f32 %v333, %v410
    %s414 = scalar_lea.vmem %s0, 40
    %v415 = vld [vmem:[%s414] sm:$0xff]
    %v416 = vld [vmem:[%s1 + $0x14] sm:$0xf]
    %v418 = vsel %vm20, %v415, 0
    %v421 = vsel %vm24, %v416, 0
    %423 = vmatprep.subr.mxu0 0.0
    %424 = vmatpush1.msra.mxu0 0.0
    %425 = vmatprep.subr.mxu0 0.0
    %426 = vmatpush1.msra.mxu0 0.0
    %427 = vmatprep.subr.mxu0 0.0
    %428 = vmatpush1.msra.mxu0 0.0
    %429 = vmatprep.subr.mxu0 0.0
    %430 = vmatpush1.msra.mxu0 0.0
    %431 = vmatprep.subr.mxu0 0.0
    %432 = vmatpush1.msra.mxu0 0.0
    %433 = vmatprep.subr.mxu0 0.0
    %434 = vmatpush1.msra.mxu0 0.0
    %435 = vmatprep.subr.mxu0 0.0
    %436 = vmatpush1.msra.mxu0 0.0
    %437 = vmatprep.subr.mxu0 0.0
    %438 = vmatpush1.msra.mxu0 0.0
    %439 = vmatprep.subr.mxu0 0.0
    %440 = vmatpush1.msra.mxu0 0.0
    %441 = vmatprep.subr.mxu0 0.0
    %442 = vmatpush1.msra.mxu0 0.0
    %443 = vmatprep.subr.mxu0 0.0
    %444 = vmatpush1.msra.mxu0 0.0
    %445 = vmatprep.subr.mxu0 0.0
    %446 = vmatpush1.msra.mxu0 0.0
    %447 = vmatprep.subr.mxu0 0.0
    %448 = vmatpush1.msra.mxu0 0.0
    %449 = vmatprep.subr.mxu0 0.0
    %450 = vmatpush1.msra.mxu0 0.0
    %451 = vmatprep.subr.mxu0 0.0
    %452 = vmatpush1.msra.mxu0 0.0
    %453 = vmatprep.subr.mxu0 0.0
    %454 = vmatpush1.msra.mxu0 %v421
    %455 = vmatprep.subr.mxu0 0.0
    %456 = vmatpush2.msra.mxu0 0.0
    %457 = vmatprep.subr.mxu0 0.0
    %458 = vmatpush2.msra.mxu0 0.0
    %459 = vmatprep.subr.mxu0 0.0
    %460 = vmatpush2.msra.mxu0 0.0
    %461 = vmatprep.subr.mxu0 0.0
    %462 = vmatpush2.msra.mxu0 0.0
    %463 = vmatprep.subr.mxu0 0.0
    %464 = vmatpush2.msra.mxu0 0.0
    %465 = vmatprep.subr.mxu0 0.0
    %466 = vmatpush2.msra.mxu0 0.0
    %467 = vmatprep.subr.mxu0 0.0
    %468 = vmatpush2.msra.mxu0 0.0
    %469 = vmatprep.subr.mxu0 0.0
    %470 = vmatpush2.msra.mxu0 0.0
    %471 = vmatprep.subr.mxu0 0.0
    %472 = vmatpush2.msra.mxu0 0.0
    %473 = vmatprep.subr.mxu0 0.0
    %474 = vmatpush2.msra.mxu0 0.0
    %475 = vmatprep.subr.mxu0 0.0
    %476 = vmatpush2.msra.mxu0 0.0
    %477 = vmatprep.subr.mxu0 0.0
    %478 = vmatpush2.msra.mxu0 0.0
    %479 = vmatprep.subr.mxu0 0.0
    %480 = vmatpush2.msra.mxu0 0.0
    %481 = vmatprep.subr.mxu0 0.0
    %482 = vmatpush2.msra.mxu0 0.0
    %483 = vmatprep.subr.mxu0 0.0
    %484 = vmatpush2.msra.mxu0 0.0
    %485 = vmatprep.subr.mxu0 0.0
    %486 = vmatpush2.msra.mxu0 0.0
    %487 = vmatprep.mubr.f32.mxu0 0.0
    %488 = vmatmul.mubr.f32.gmra.mxu0 %v418
    %v489 = vpop.f32.mrf.mxu0
    %v490 = vadd.f32 0.0, %v489
    %v491 = vpop.f32.mrf.mxu0
    %492 = vdwg.mxu0
    %v493 = vadd.f32 %v413, %v490
    %s494 = scalar_lea.vmem %s0, 48
    %v495 = vld [vmem:[%s494] sm:$0xff]
    %v496 = vld [vmem:[%s1 + $0x18] sm:$0xf]
    %v498 = vsel %vm20, %v495, 0
    %v501 = vsel %vm24, %v496, 0
    %503 = vmatprep.subr.mxu0 0.0
    %504 = vmatpush1.msra.mxu0 0.0
    %505 = vmatprep.subr.mxu0 0.0
    %506 = vmatpush1.msra.mxu0 0.0
    %507 = vmatprep.subr.mxu0 0.0
    %508 = vmatpush1.msra.mxu0 0.0
    %509 = vmatprep.subr.mxu0 0.0
    %510 = vmatpush1.msra.mxu0 0.0
    %511 = vmatprep.subr.mxu0 0.0
    %512 = vmatpush1.msra.mxu0 0.0
    %513 = vmatprep.subr.mxu0 0.0
    %514 = vmatpush1.msra.mxu0 0.0
    %515 = vmatprep.subr.mxu0 0.0
    %516 = vmatpush1.msra.mxu0 0.0
    %517 = vmatprep.subr.mxu0 0.0
    %518 = vmatpush1.msra.mxu0 0.0
    %519 = vmatprep.subr.mxu0 0.0
    %520 = vmatpush1.msra.mxu0 0.0
    %521 = vmatprep.subr.mxu0 0.0
    %522 = vmatpush1.msra.mxu0 0.0
    %523 = vmatprep.subr.mxu0 0.0
    %524 = vmatpush1.msra.mxu0 0.0
    %525 = vmatprep.subr.mxu0 0.0
    %526 = vmatpush1.msra.mxu0 0.0
    %527 = vmatprep.subr.mxu0 0.0
    %528 = vmatpush1.msra.mxu0 0.0
    %529 = vmatprep.subr.mxu0 0.0
    %530 = vmatpush1.msra.mxu0 0.0
    %531 = vmatprep.subr.mxu0 0.0
    %532 = vmatpush1.msra.mxu0 0.0
    %533 = vmatprep.subr.mxu0 0.0
    %534 = vmatpush1.msra.mxu0 %v501
    %535 = vmatprep.subr.mxu0 0.0
    %536 = vmatpush2.msra.mxu0 0.0
    %537 = vmatprep.subr.mxu0 0.0
    %538 = vmatpush2.msra.mxu0 0.0
    %539 = vmatprep.subr.mxu0 0.0
    %540 = vmatpush2.msra.mxu0 0.0
    %541 = vmatprep.subr.mxu0 0.0
    %542 = vmatpush2.msra.mxu0 0.0
    %543 = vmatprep.subr.mxu0 0.0
    %544 = vmatpush2.msra.mxu0 0.0
    %545 = vmatprep.subr.mxu0 0.0
    %546 = vmatpush2.msra.mxu0 0.0
    %547 = vmatprep.subr.mxu0 0.0
    %548 = vmatpush2.msra.mxu0 0.0
    %549 = vmatprep.subr.mxu0 0.0
    %550 = vmatpush2.msra.mxu0 0.0
    %551 = vmatprep.subr.mxu0 0.0
    %552 = vmatpush2.msra.mxu0 0.0
    %553 = vmatprep.subr.mxu0 0.0
    %554 = vmatpush2.msra.mxu0 0.0
    %555 = vmatprep.subr.mxu0 0.0
    %556 = vmatpush2.msra.mxu0 0.0
    %557 = vmatprep.subr.mxu0 0.0
    %558 = vmatpush2.msra.mxu0 0.0
    %559 = vmatprep.subr.mxu0 0.0
    %560 = vmatpush2.msra.mxu0 0.0
    %561 = vmatprep.subr.mxu0 0.0
    %562 = vmatpush2.msra.mxu0 0.0
    %563 = vmatprep.subr.mxu0 0.0
    %564 = vmatpush2.msra.mxu0 0.0
    %565 = vmatprep.subr.mxu0 0.0
    %566 = vmatpush2.msra.mxu0 0.0
    %567 = vmatprep.mubr.f32.mxu0 0.0
    %568 = vmatmul.mubr.f32.gmra.mxu0 %v498
    %v569 = vpop.f32.mrf.mxu0
    %v570 = vadd.f32 0.0, %v569
    %v571 = vpop.f32.mrf.mxu0
    %572 = vdwg.mxu0
    %v573 = vadd.f32 %v493, %v570
    %s574 = scalar_lea.vmem %s0, 56
    %v575 = vld [vmem:[%s574] sm:$0xff]
    %v576 = vld [vmem:[%s1 + $0x1c] sm:$0xf]
    %v578 = vsel %vm20, %v575, 0
    %v581 = vsel %vm24, %v576, 0
    %583 = vmatprep.subr.mxu0 0.0
    %584 = vmatpush1.msra.mxu0 0.0
    %585 = vmatprep.subr.mxu0 0.0
    %586 = vmatpush1.msra.mxu0 0.0
    %587 = vmatprep.subr.mxu0 0.0
    %588 = vmatpush1.msra.mxu0 0.0
    %589 = vmatprep.subr.mxu0 0.0
    %590 = vmatpush1.msra.mxu0 0.0
    %591 = vmatprep.subr.mxu0 0.0
    %592 = vmatpush1.msra.mxu0 0.0
    %593 = vmatprep.subr.mxu0 0.0
    %594 = vmatpush1.msra.mxu0 0.0
    %595 = vmatprep.subr.mxu0 0.0
    %596 = vmatpush1.msra.mxu0 0.0
    %597 = vmatprep.subr.mxu0 0.0
    %598 = vmatpush1.msra.mxu0 0.0
    %599 = vmatprep.subr.mxu0 0.0
    %600 = vmatpush1.msra.mxu0 0.0
    %601 = vmatprep.subr.mxu0 0.0
    %602 = vmatpush1.msra.mxu0 0.0
    %603 = vmatprep.subr.mxu0 0.0
    %604 = vmatpush1.msra.mxu0 0.0
    %605 = vmatprep.subr.mxu0 0.0
    %606 = vmatpush1.msra.mxu0 0.0
    %607 = vmatprep.subr.mxu0 0.0
    %608 = vmatpush1.msra.mxu0 0.0
    %609 = vmatprep.subr.mxu0 0.0
    %610 = vmatpush1.msra.mxu0 0.0
    %611 = vmatprep.subr.mxu0 0.0
    %612 = vmatpush1.msra.mxu0 0.0
    %613 = vmatprep.subr.mxu0 0.0
    %614 = vmatpush1.msra.mxu0 %v581
    %615 = vmatprep.subr.mxu0 0.0
    %616 = vmatpush2.msra.mxu0 0.0
    %617 = vmatprep.subr.mxu0 0.0
    %618 = vmatpush2.msra.mxu0 0.0
    %619 = vmatprep.subr.mxu0 0.0
    %620 = vmatpush2.msra.mxu0 0.0
    %621 = vmatprep.subr.mxu0 0.0
    %622 = vmatpush2.msra.mxu0 0.0
    %623 = vmatprep.subr.mxu0 0.0
    %624 = vmatpush2.msra.mxu0 0.0
    %625 = vmatprep.subr.mxu0 0.0
    %626 = vmatpush2.msra.mxu0 0.0
    %627 = vmatprep.subr.mxu0 0.0
    %628 = vmatpush2.msra.mxu0 0.0
    %629 = vmatprep.subr.mxu0 0.0
    %630 = vmatpush2.msra.mxu0 0.0
    %631 = vmatprep.subr.mxu0 0.0
    %632 = vmatpush2.msra.mxu0 0.0
    %633 = vmatprep.subr.mxu0 0.0
    %634 = vmatpush2.msra.mxu0 0.0
    %635 = vmatprep.subr.mxu0 0.0
    %636 = vmatpush2.msra.mxu0 0.0
    %637 = vmatprep.subr.mxu0 0.0
    %638 = vmatpush2.msra.mxu0 0.0
    %639 = vmatprep.subr.mxu0 0.0
    %640 = vmatpush2.msra.mxu0 0.0
    %641 = vmatprep.subr.mxu0 0.0
    %642 = vmatpush2.msra.mxu0 0.0
    %643 = vmatprep.subr.mxu0 0.0
    %644 = vmatpush2.msra.mxu0 0.0
    %645 = vmatprep.subr.mxu0 0.0
    %646 = vmatpush2.msra.mxu0 0.0
    %647 = vmatprep.mubr.f32.mxu0 0.0
    %648 = vmatmul.mubr.f32.gmra.mxu0 %v578
    %v649 = vpop.f32.mrf.mxu0
    %v650 = vadd.f32 0.0, %v649
    %v651 = vpop.f32.mrf.mxu0
    %652 = vdwg.mxu0
    %v653 = vadd.f32 %v573, %v650
    %v654 = vld [vmem:[%s2] sm:$0xff]
    %v655 = vld [vmem:[%s2 + $0x8] sm:$0xff]
    %v656 = vld [vmem:[%s2 + $0x10] sm:$0xff]
    %v657 = vld [vmem:[%s2 + $0x18] sm:$0xff]
    %v658 = vld [vmem:[%s2 + $0x20] sm:$0xff]
    %v659 = vld [vmem:[%s2 + $0x28] sm:$0xff]
    %v660 = vld [vmem:[%s2 + $0x30] sm:$0xff]
    %v661 = vld [vmem:[%s2 + $0x38] sm:$0xff]
    %v662 = vld [vmem:[%s1 + $0x20] sm:$0x3]
    %vm663 = vcmask 523264
    %v665 = vsel %vm663, %v653, 0
    %667 = vmatprep.subr.mxu0 0.0
    %668 = vmatpush1.msra.mxu0 0.0
    %669 = vmatprep.subr.mxu0 0.0
    %670 = vmatpush1.msra.mxu0 0.0
    %671 = vmatprep.subr.mxu0 0.0
    %672 = vmatpush1.msra.mxu0 0.0
    %673 = vmatprep.subr.mxu0 0.0
    %674 = vmatpush1.msra.mxu0 0.0
    %675 = vmatprep.subr.mxu0 0.0
    %676 = vmatpush1.msra.mxu0 0.0
    %677 = vmatprep.subr.mxu0 0.0
    %678 = vmatpush1.msra.mxu0 0.0
    %679 = vmatprep.subr.mxu0 0.0
    %680 = vmatpush1.msra.mxu0 0.0
    %681 = vmatprep.subr.mxu0 0.0
    %682 = vmatpush1.msra.mxu0 0.0
    %683 = vmatprep.subr.mxu0 0.0
    %684 = vmatpush1.msra.mxu0 %v661
    %685 = vmatprep.subr.mxu0 0.0
    %686 = vmatpush1.msra.mxu0 %v660
    %687 = vmatprep.subr.mxu0 0.0
    %688 = vmatpush1.msra.mxu0 %v659
    %689 = vmatprep.subr.mxu0 0.0
    %690 = vmatpush1.msra.mxu0 %v658
    %691 = vmatprep.subr.mxu0 0.0
    %692 = vmatpush1.msra.mxu0 %v657
    %693 = vmatprep.subr.mxu0 0.0
    %694 = vmatpush1.msra.mxu0 %v656
    %695 = vmatprep.subr.mxu0 0.0
    %696 = vmatpush1.msra.mxu0 %v655
    %697 = vmatprep.subr.mxu0 0.0
    %698 = vmatpush1.msra.mxu0 %v654
    %699 = vmatprep.subr.mxu0 0.0
    %700 = vmatpush2.msra.mxu0 0.0
    %701 = vmatprep.subr.mxu0 0.0
    %702 = vmatpush2.msra.mxu0 0.0
    %703 = vmatprep.subr.mxu0 0.0
    %704 = vmatpush2.msra.mxu0 0.0
    %705 = vmatprep.subr.mxu0 0.0
    %706 = vmatpush2.msra.mxu0 0.0
    %707 = vmatprep.subr.mxu0 0.0
    %708 = vmatpush2.msra.mxu0 0.0
    %709 = vmatprep.subr.mxu0 0.0
    %710 = vmatpush2.msra.mxu0 0.0
    %711 = vmatprep.subr.mxu0 0.0
    %712 = vmatpush2.msra.mxu0 0.0
    %713 = vmatprep.subr.mxu0 0.0
    %714 = vmatpush2.msra.mxu0 0.0
    %715 = vmatprep.subr.mxu0 0.0
    %716 = vmatpush2.msra.mxu0 0.0
    %717 = vmatprep.subr.mxu0 0.0
    %718 = vmatpush2.msra.mxu0 0.0
    %719 = vmatprep.subr.mxu0 0.0
    %720 = vmatpush2.msra.mxu0 0.0
    %721 = vmatprep.subr.mxu0 0.0
    %722 = vmatpush2.msra.mxu0 0.0
    %723 = vmatprep.subr.mxu0 0.0
    %724 = vmatpush2.msra.mxu0 0.0
    %725 = vmatprep.subr.mxu0 0.0
    %726 = vmatpush2.msra.mxu0 0.0
    %727 = vmatprep.subr.mxu0 0.0
    %728 = vmatpush2.msra.mxu0 0.0
    %729 = vmatprep.subr.mxu0 0.0
    %730 = vmatpush2.msra.mxu0 0.0
    %731 = vmatprep.mubr.f32.mxu0 0.0
    %732 = vmatmul.mubr.f32.gmra.mxu0 %v665
    %v733 = vpop.f32.mrf.mxu0
    %v734 = vadd.f32 0.0, %v733
    %v735 = vpop.f32.mrf.mxu0
    %736 = vdwg.mxu0
    %v738 = vsel %vm663, %v662, 0
    %740 = vmatprep.subr.mxu0 0.0
    %741 = vmatpush1.xpose.msra.mxu0 0.0
    %742 = vmatprep.subr.mxu0 0.0
    %743 = vmatpush1.xpose.msra.mxu0 0.0
    %744 = vmatprep.subr.mxu0 0.0
    %745 = vmatpush1.xpose.msra.mxu0 0.0
    %746 = vmatprep.subr.mxu0 0.0
    %747 = vmatpush1.xpose.msra.mxu0 0.0
    %748 = vmatprep.subr.mxu0 0.0
    %749 = vmatpush1.xpose.msra.mxu0 0.0
    %750 = vmatprep.subr.mxu0 0.0
    %751 = vmatpush1.xpose.msra.mxu0 0.0
    %752 = vmatprep.subr.mxu0 0.0
    %753 = vmatpush1.xpose.msra.mxu0 0.0
    %754 = vmatprep.subr.mxu0 0.0
    %755 = vmatpush1.xpose.msra.mxu0 0.0
    %756 = vmatprep.subr.mxu0 0.0
    %757 = vmatpush1.xpose.msra.mxu0 0.0
    %758 = vmatprep.subr.mxu0 0.0
    %759 = vmatpush1.xpose.msra.mxu0 0.0
    %760 = vmatprep.subr.mxu0 0.0
    %761 = vmatpush1.xpose.msra.mxu0 0.0
    %762 = vmatprep.subr.mxu0 0.0
    %763 = vmatpush1.xpose.msra.mxu0 0.0
    %764 = vmatprep.subr.mxu0 0.0
    %765 = vmatpush1.xpose.msra.mxu0 0.0
    %766 = vmatprep.subr.mxu0 0.0
    %767 = vmatpush1.xpose.msra.mxu0 0.0
    %768 = vmatprep.subr.mxu0 0.0
    %769 = vmatpush1.xpose.msra.mxu0 0.0
    %770 = vmatprep.subr.mxu0 0.0
    %771 = vmatpush1.xpose.msra.mxu0 %v665
    %772 = vmatprep.subr.mxu0 0.0
    %773 = vmatpush2.xpose.msra.mxu0 0.0
    %774 = vmatprep.subr.mxu0 0.0
    %775 = vmatpush2.xpose.msra.mxu0 0.0
    %776 = vmatprep.subr.mxu0 0.0
    %777 = vmatpush2.xpose.msra.mxu0 0.0
    %778 = vmatprep.subr.mxu0 0.0
    %779 = vmatpush2.xpose.msra.mxu0 0.0
    %780 = vmatprep.subr.mxu0 0.0
    %781 = vmatpush2.xpose.msra.mxu0 0.0
    %782 = vmatprep.subr.mxu0 0.0
    %783 = vmatpush2.xpose.msra.mxu0 0.0
    %784 = vmatprep.subr.mxu0 0.0
    %785 = vmatpush2.xpose.msra.mxu0 0.0
    %786 = vmatprep.subr.mxu0 0.0
    %787 = vmatpush2.xpose.msra.mxu0 0.0
    %788 = vmatprep.subr.mxu0 0.0
    %789 = vmatpush2.xpose.msra.mxu0 0.0
    %790 = vmatprep.subr.mxu0 0.0
    %791 = vmatpush2.xpose.msra.mxu0 0.0
    %792 = vmatprep.subr.mxu0 0.0
    %793 = vmatpush2.xpose.msra.mxu0 0.0
    %794 = vmatprep.subr.mxu0 0.0
    %795 = vmatpush2.xpose.msra.mxu0 0.0
    %796 = vmatprep.subr.mxu0 0.0
    %797 = vmatpush2.xpose.msra.mxu0 0.0
    %798 = vmatprep.subr.mxu0 0.0
    %799 = vmatpush2.xpose.msra.mxu0 0.0
    %800 = vmatprep.subr.mxu0 0.0
    %801 = vmatpush2.xpose.msra.mxu0 0.0
    %802 = vmatprep.subr.mxu0 0.0
    %803 = vmatpush2.xpose.msra.mxu0 0.0
    %804 = vmatprep.mubr.f32.mxu0 0.0
    %805 = vmatmul.mubr.f32.gmra.mxu0 %v738
    %v806 = vpop.f32.mrf.mxu0
    %v807 = vadd.f32 0.0, %v806
    %v808 = vpop.f32.mrf.mxu0
    %809 = vdwg.mxu0
    %v810 = vlaneseq
    %v811 = vshrl.u32 %v810, 7
    %v812 = vlaneseq
    %v813 = vand.u32 %v812, 127
    %vm814 = vcmp.ne.s32.totalorder %v811, %v813
    %816 = vset.pattern.permute.xlu0 0
    %817 = vperm.xlu0 %816, %v734
    %v818 = vpop.permute.xlu0 %817
    %v820 = vlaneseq
    %v821 = vshrl.u32 %v820, 7
    %v822 = vsub.s32 0, %v821
    %v823 = vrot.slane %v807, %v822
    %v824 = vadd.f32 %v818, %v823
    %vm825 = vcmp.gt.f32.partialorder %v824, 0.0
    %v826 = vmul.f32 %v824, 0.01
    %v827 = vsel %vm825, %v824, %v826
    %v828 = vsel %vm814, %v827, -9e+15
    %vm829 = vcmask 64512
    %v830 = vsel %vm829, %v828, -inf
    %831 = vmax.xlane.f32.xlu0 %v830
    %v832 = vpop.xlane.xlu0 %831
    %v833 = vsub.f32 %v828, %v832
    %v834 = vmul.f32 %v833, 1.442695
    %v835 = vpow.pop %v834
    %v836 = vsel %vm829, %v835, 0.0
    %837 = vadd.xlane.f32.xlu0 %v836
    %v838 = vpop.xlane.xlu0 %837
    %v839 = vrcp.pop %v838
    %v840 = vmul.f32 %v835, %v839
    %v842 = vsel %vm829, %v840, 0
    %844 = vmatprep.subr.mxu0 0.0
    %845 = vmatpush1.msra.mxu0 0.0
    %846 = vmatprep.subr.mxu0 0.0
    %847 = vmatpush1.msra.mxu0 0.0
    %848 = vmatprep.subr.mxu0 0.0
    %849 = vmatpush1.msra.mxu0 0.0
    %850 = vmatprep.subr.mxu0 0.0
    %851 = vmatpush1.msra.mxu0 0.0
    %852 = vmatprep.subr.mxu0 0.0
    %853 = vmatpush1.msra.mxu0 0.0
    %854 = vmatprep.subr.mxu0 0.0
    %855 = vmatpush1.msra.mxu0 0.0
    %856 = vmatprep.subr.mxu0 0.0
    %857 = vmatpush1.msra.mxu0 0.0
    %858 = vmatprep.subr.mxu0 0.0
    %859 = vmatpush1.msra.mxu0 0.0
    %860 = vmatprep.subr.mxu0 0.0
    %861 = vmatpush1.msra.mxu0 0.0
    %862 = vmatprep.subr.mxu0 0.0
    %863 = vmatpush1.msra.mxu0 0.0
    %864 = vmatprep.subr.mxu0 0.0
    %865 = vmatpush1.msra.mxu0 0.0
    %866 = vmatprep.subr.mxu0 0.0
    %867 = vmatpush1.msra.mxu0 0.0
    %868 = vmatprep.subr.mxu0 0.0
    %869 = vmatpush1.msra.mxu0 0.0
    %870 = vmatprep.subr.mxu0 0.0
    %871 = vmatpush1.msra.mxu0 0.0
    %872 = vmatprep.subr.mxu0 0.0
    %873 = vmatpush1.msra.mxu0 0.0
    %874 = vmatprep.subr.mxu0 0.0
    %875 = vmatpush1.msra.mxu0 %v653
    %876 = vmatprep.subr.mxu0 0.0
    %877 = vmatpush2.msra.mxu0 0.0
    %878 = vmatprep.subr.mxu0 0.0
    %879 = vmatpush2.msra.mxu0 0.0
    %880 = vmatprep.subr.mxu0 0.0
    %881 = vmatpush2.msra.mxu0 0.0
    %882 = vmatprep.subr.mxu0 0.0
    %883 = vmatpush2.msra.mxu0 0.0
    %884 = vmatprep.subr.mxu0 0.0
    %885 = vmatpush2.msra.mxu0 0.0
    %886 = vmatprep.subr.mxu0 0.0
    %887 = vmatpush2.msra.mxu0 0.0
    %888 = vmatprep.subr.mxu0 0.0
    %889 = vmatpush2.msra.mxu0 0.0
    %890 = vmatprep.subr.mxu0 0.0
    %891 = vmatpush2.msra.mxu0 0.0
    %892 = vmatprep.subr.mxu0 0.0
    %893 = vmatpush2.msra.mxu0 0.0
    %894 = vmatprep.subr.mxu0 0.0
    %895 = vmatpush2.msra.mxu0 0.0
    %896 = vmatprep.subr.mxu0 0.0
    %897 = vmatpush2.msra.mxu0 0.0
    %898 = vmatprep.subr.mxu0 0.0
    %899 = vmatpush2.msra.mxu0 0.0
    %900 = vmatprep.subr.mxu0 0.0
    %901 = vmatpush2.msra.mxu0 0.0
    %902 = vmatprep.subr.mxu0 0.0
    %903 = vmatpush2.msra.mxu0 0.0
    %904 = vmatprep.subr.mxu0 0.0
    %905 = vmatpush2.msra.mxu0 0.0
    %906 = vmatprep.subr.mxu0 0.0
    %907 = vmatpush2.msra.mxu0 0.0
    %908 = vmatprep.mubr.f32.mxu0 0.0
    %909 = vmatmul.mubr.f32.gmra.mxu0 %v842
    %v910 = vpop.f32.mrf.mxu0
    %v911 = vadd.f32 0.0, %v910
    %v912 = vpop.f32.mrf.mxu0
    %913 = vdwg.mxu0
    %vm914 = vcmp.gt.f32.partialorder %v911, 0.0
    %v915 = vmul.f32 %v911, 1.442695
    %v916 = vpow.pop %v915
    %v917 = vsub.f32 %v916, 1.0
    %v918 = vsel %vm914, %v911, %v917
    %919 = vset.pattern.permute.xlu0 1
    %920 = vperm.xlu0 %919, %v734
    %v921 = vpop.permute.xlu0 %920
    %v923 = vlaneseq
    %v924 = vshrl.u32 %v923, 7
    %v925 = vsub.s32 1, %v924
    %v926 = vrot.slane %v807, %v925
    %v927 = vadd.f32 %v921, %v926
    %vm928 = vcmp.gt.f32.partialorder %v927, 0.0
    %v929 = vmul.f32 %v927, 0.01
    %v930 = vsel %vm928, %v927, %v929
    %v931 = vsel %vm814, %v930, -9e+15
    %v932 = vsel %vm829, %v931, -inf
    %933 = vmax.xlane.f32.xlu0 %v932
    %v934 = vpop.xlane.xlu0 %933
    %v935 = vsub.f32 %v931, %v934
    %v936 = vmul.f32 %v935, 1.442695
    %v937 = vpow.pop %v936
    %v938 = vsel %vm829, %v937, 0.0
    %939 = vadd.xlane.f32.xlu0 %v938
    %v940 = vpop.xlane.xlu0 %939
    %v941 = vrcp.pop %v940
    %v942 = vmul.f32 %v937, %v941
    %943 = vrot.lane.b32.xlu0 %v653, 96
    %v944 = vpop.permute.xlu0 %943
    %v947 = vsel %vm829, %v942, 0
    %949 = vmatprep.subr.mxu0 0.0
    %950 = vmatpush1.msra.mxu0 0.0
    %951 = vmatprep.subr.mxu0 0.0
    %952 = vmatpush1.msra.mxu0 0.0
    %953 = vmatprep.subr.mxu0 0.0
    %954 = vmatpush1.msra.mxu0 0.0
    %955 = vmatprep.subr.mxu0 0.0
    %956 = vmatpush1.msra.mxu0 0.0
    %957 = vmatprep.subr.mxu0 0.0
    %958 = vmatpush1.msra.mxu0 0.0
    %959 = vmatprep.subr.mxu0 0.0
    %960 = vmatpush1.msra.mxu0 0.0
    %961 = vmatprep.subr.mxu0 0.0
    %962 = vmatpush1.msra.mxu0 0.0
    %963 = vmatprep.subr.mxu0 0.0
    %964 = vmatpush1.msra.mxu0 0.0
    %965 = vmatprep.subr.mxu0 0.0
    %966 = vmatpush1.msra.mxu0 0.0
    %967 = vmatprep.subr.mxu0 0.0
    %968 = vmatpush1.msra.mxu0 0.0
    %969 = vmatprep.subr.mxu0 0.0
    %970 = vmatpush1.msra.mxu0 0.0
    %971 = vmatprep.subr.mxu0 0.0
    %972 = vmatpush1.msra.mxu0 0.0
    %973 = vmatprep.subr.mxu0 0.0
    %974 = vmatpush1.msra.mxu0 0.0
    %975 = vmatprep.subr.mxu0 0.0
    %976 = vmatpush1.msra.mxu0 0.0
    %977 = vmatprep.subr.mxu0 0.0
    %978 = vmatpush1.msra.mxu0 0.0
    %979 = vmatprep.subr.mxu0 0.0
    %980 = vmatpush1.msra.mxu0 %v944
    %981 = vmatprep.subr.mxu0 0.0
    %982 = vmatpush2.msra.mxu0 0.0
    %983 = vmatprep.subr.mxu0 0.0
    %984 = vmatpush2.msra.mxu0 0.0
    %985 = vmatprep.subr.mxu0 0.0
    %986 = vmatpush2.msra.mxu0 0.0
    %987 = vmatprep.subr.mxu0 0.0
    %988 = vmatpush2.msra.mxu0 0.0
    %989 = vmatprep.subr.mxu0 0.0
    %990 = vmatpush2.msra.mxu0 0.0
    %991 = vmatprep.subr.mxu0 0.0
    %992 = vmatpush2.msra.mxu0 0.0
    %993 = vmatprep.subr.mxu0 0.0
    %994 = vmatpush2.msra.mxu0 0.0
    %995 = vmatprep.subr.mxu0 0.0
    %996 = vmatpush2.msra.mxu0 0.0
    %997 = vmatprep.subr.mxu0 0.0
    %998 = vmatpush2.msra.mxu0 0.0
    %999 = vmatprep.subr.mxu0 0.0
    %1000 = vmatpush2.msra.mxu0 0.0
    %1001 = vmatprep.subr.mxu0 0.0
    %1002 = vmatpush2.msra.mxu0 0.0
    %1003 = vmatprep.subr.mxu0 0.0
    %1004 = vmatpush2.msra.mxu0 0.0
    %1005 = vmatprep.subr.mxu0 0.0
    %1006 = vmatpush2.msra.mxu0 0.0
    %1007 = vmatprep.subr.mxu0 0.0
    %1008 = vmatpush2.msra.mxu0 0.0
    %1009 = vmatprep.subr.mxu0 0.0
    %1010 = vmatpush2.msra.mxu0 0.0
    %1011 = vmatprep.subr.mxu0 0.0
    %1012 = vmatpush2.msra.mxu0 0.0
    %1013 = vmatprep.mubr.f32.mxu0 0.0
    %1014 = vmatmul.mubr.f32.gmra.mxu0 %v947
    %v1015 = vpop.f32.mrf.mxu0
    %v1016 = vadd.f32 0.0, %v1015
    %v1017 = vpop.f32.mrf.mxu0
    %1018 = vdwg.mxu0
    %vm1019 = vcmp.gt.f32.partialorder %v1016, 0.0
    %v1020 = vmul.f32 %v1016, 1.442695
    %v1021 = vpow.pop %v1020
    %v1022 = vsub.f32 %v1021, 1.0
    %v1023 = vsel %vm1019, %v1016, %v1022
    %1025 = vrot.lane.b32.xlu0 %v1023, 32
    %v1026 = vpop.permute.xlu0 %1025
    %vm1028 = vcmask 261120
    %v1029 = vsel %vm1028, %v918, %v1026
    %v1030 = vld [vmem:[%s2 + $0x40] sm:$0x1]
    %v1031 = vld [vmem:[%s2 + $0x41] sm:$0x1]
    %1040 = vrot.lane.b32.xlu0 %v654, 126
    %v1041 = vpop.permute.xlu0 %1040
    %1042 = vrot.lane.b32.xlu0 %v655, 126
    %v1043 = vpop.permute.xlu0 %1042
    %1044 = vrot.lane.b32.xlu0 %v656, 126
    %v1045 = vpop.permute.xlu0 %1044
    %1046 = vrot.lane.b32.xlu0 %v657, 126
    %v1047 = vpop.permute.xlu0 %1046
    %1048 = vrot.lane.b32.xlu0 %v658, 126
    %v1049 = vpop.permute.xlu0 %1048
    %1050 = vrot.lane.b32.xlu0 %v659, 126
    %v1051 = vpop.permute.xlu0 %1050
    %1052 = vrot.lane.b32.xlu0 %v660, 126
    %v1053 = vpop.permute.xlu0 %1052
    %1054 = vrot.lane.b32.xlu0 %v661, 126
    %v1055 = vpop.permute.xlu0 %1054
    %v1065 = vsel %vm663, %v1029, 0
    %1067 = vmatprep.subr.mxu0 0.0
    %1068 = vmatpush1.msra.mxu0 0.0
    %1069 = vmatprep.subr.mxu0 0.0
    %1070 = vmatpush1.msra.mxu0 0.0
    %1071 = vmatprep.subr.mxu0 0.0
    %1072 = vmatpush1.msra.mxu0 0.0
    %1073 = vmatprep.subr.mxu0 0.0
    %1074 = vmatpush1.msra.mxu0 0.0
    %1075 = vmatprep.subr.mxu0 0.0
    %1076 = vmatpush1.msra.mxu0 0.0
    %1077 = vmatprep.subr.mxu0 0.0
    %1078 = vmatpush1.msra.mxu0 0.0
    %1079 = vmatprep.subr.mxu0 0.0
    %1080 = vmatpush1.msra.mxu0 0.0
    %1081 = vmatprep.subr.mxu0 0.0
    %1082 = vmatpush1.msra.mxu0 0.0
    %1083 = vmatprep.subr.mxu0 0.0
    %1084 = vmatpush1.msra.mxu0 %v1055
    %1085 = vmatprep.subr.mxu0 0.0
    %1086 = vmatpush1.msra.mxu0 %v1053
    %1087 = vmatprep.subr.mxu0 0.0
    %1088 = vmatpush1.msra.mxu0 %v1051
    %1089 = vmatprep.subr.mxu0 0.0
    %1090 = vmatpush1.msra.mxu0 %v1049
    %1091 = vmatprep.subr.mxu0 0.0
    %1092 = vmatpush1.msra.mxu0 %v1047
    %1093 = vmatprep.subr.mxu0 0.0
    %1094 = vmatpush1.msra.mxu0 %v1045
    %1095 = vmatprep.subr.mxu0 0.0
    %1096 = vmatpush1.msra.mxu0 %v1043
    %1097 = vmatprep.subr.mxu0 0.0
    %1098 = vmatpush1.msra.mxu0 %v1041
    %1099 = vmatprep.subr.mxu0 0.0
    %1100 = vmatpush2.msra.mxu0 0.0
    %1101 = vmatprep.subr.mxu0 0.0
    %1102 = vmatpush2.msra.mxu0 0.0
    %1103 = vmatprep.subr.mxu0 0.0
    %1104 = vmatpush2.msra.mxu0 0.0
    %1105 = vmatprep.subr.mxu0 0.0
    %1106 = vmatpush2.msra.mxu0 0.0
    %1107 = vmatprep.subr.mxu0 0.0
    %1108 = vmatpush2.msra.mxu0 0.0
    %1109 = vmatprep.subr.mxu0 0.0
    %1110 = vmatpush2.msra.mxu0 0.0
    %1111 = vmatprep.subr.mxu0 0.0
    %1112 = vmatpush2.msra.mxu0 0.0
    %1113 = vmatprep.subr.mxu0 0.0
    %1114 = vmatpush2.msra.mxu0 0.0
    %1115 = vmatprep.subr.mxu0 0.0
    %1116 = vmatpush2.msra.mxu0 0.0
    %1117 = vmatprep.subr.mxu0 0.0
    %1118 = vmatpush2.msra.mxu0 0.0
    %1119 = vmatprep.subr.mxu0 0.0
    %1120 = vmatpush2.msra.mxu0 0.0
    %1121 = vmatprep.subr.mxu0 0.0
    %1122 = vmatpush2.msra.mxu0 0.0
    %1123 = vmatprep.subr.mxu0 0.0
    %1124 = vmatpush2.msra.mxu0 0.0
    %1125 = vmatprep.subr.mxu0 0.0
    %1126 = vmatpush2.msra.mxu0 0.0
    %1127 = vmatprep.subr.mxu0 0.0
    %1128 = vmatpush2.msra.mxu0 0.0
    %1129 = vmatprep.subr.mxu0 0.0
    %1130 = vmatpush2.msra.mxu0 0.0
    %1131 = vmatprep.mubr.f32.mxu0 0.0
    %1132 = vmatmul.mubr.f32.gmra.mxu0 %v1065
    %v1133 = vpop.f32.mrf.mxu0
    %v1134 = vadd.f32 0.0, %v1133
    %v1135 = vpop.f32.mrf.mxu0
    %1136 = vdwg.mxu0
    %v1137 = vlaneseq
    %v1138 = vshrl.u32 %v1137, 7
    %v1139 = vsub.s32 0, %v1138
    %v1140 = vrot.slane %v1030, %v1139
    %1142 = vrot.lane.b32.xlu0 %v1140, 126
    %v1143 = vpop.permute.xlu0 %1142
    %v1145 = vmul.f32 %v1134, %v1143
    %v1146 = vsel %vm829, %v1145, 0.0
    %1147 = vadd.xlane.f32.xlu0 %v1146
    %v1148 = vpop.xlane.xlu0 %1147
    %1150 = vrot.lane.b32.xlu0 %v1031, 126
    %v1151 = vpop.permute.xlu0 %1150
    %v1152 = vsel %vm829, %v1151, 0
    %v1155 = vsel %vm829, %v1134, 0
    %1157 = vmatprep.subr.mxu0 0.0
    %1158 = vmatpush1.xpose.msra.mxu0 0.0
    %1159 = vmatprep.subr.mxu0 0.0
    %1160 = vmatpush1.xpose.msra.mxu0 0.0
    %1161 = vmatprep.subr.mxu0 0.0
    %1162 = vmatpush1.xpose.msra.mxu0 0.0
    %1163 = vmatprep.subr.mxu0 0.0
    %1164 = vmatpush1.xpose.msra.mxu0 0.0
    %1165 = vmatprep.subr.mxu0 0.0
    %1166 = vmatpush1.xpose.msra.mxu0 0.0
    %1167 = vmatprep.subr.mxu0 0.0
    %1168 = vmatpush1.xpose.msra.mxu0 0.0
    %1169 = vmatprep.subr.mxu0 0.0
    %1170 = vmatpush1.xpose.msra.mxu0 0.0
    %1171 = vmatprep.subr.mxu0 0.0
    %1172 = vmatpush1.xpose.msra.mxu0 0.0
    %1173 = vmatprep.subr.mxu0 0.0
    %1174 = vmatpush1.xpose.msra.mxu0 0.0
    %1175 = vmatprep.subr.mxu0 0.0
    %1176 = vmatpush1.xpose.msra.mxu0 0.0
    %1177 = vmatprep.subr.mxu0 0.0
    %1178 = vmatpush1.xpose.msra.mxu0 0.0
    %1179 = vmatprep.subr.mxu0 0.0
    %1180 = vmatpush1.xpose.msra.mxu0 0.0
    %1181 = vmatprep.subr.mxu0 0.0
    %1182 = vmatpush1.xpose.msra.mxu0 0.0
    %1183 = vmatprep.subr.mxu0 0.0
    %1184 = vmatpush1.xpose.msra.mxu0 0.0
    %1185 = vmatprep.subr.mxu0 0.0
    %1186 = vmatpush1.xpose.msra.mxu0 0.0
    %1187 = vmatprep.subr.mxu0 0.0
    %1188 = vmatpush1.xpose.msra.mxu0 %v1155
    %1189 = vmatprep.subr.mxu0 0.0
    %1190 = vmatpush2.xpose.msra.mxu0 0.0
    %1191 = vmatprep.subr.mxu0 0.0
    %1192 = vmatpush2.xpose.msra.mxu0 0.0
    %1193 = vmatprep.subr.mxu0 0.0
    %1194 = vmatpush2.xpose.msra.mxu0 0.0
    %1195 = vmatprep.subr.mxu0 0.0
    %1196 = vmatpush2.xpose.msra.mxu0 0.0
    %1197 = vmatprep.subr.mxu0 0.0
    %1198 = vmatpush2.xpose.msra.mxu0 0.0
    %1199 = vmatprep.subr.mxu0 0.0
    %1200 = vmatpush2.xpose.msra.mxu0 0.0
    %1201 = vmatprep.subr.mxu0 0.0
    %1202 = vmatpush2.xpose.msra.mxu0 0.0
    %1203 = vmatprep.subr.mxu0 0.0
    %1204 = vmatpush2.xpose.msra.mxu0 0.0
    %1205 = vmatprep.subr.mxu0 0.0
    %1206 = vmatpush2.xpose.msra.mxu0 0.0
    %1207 = vmatprep.subr.mxu0 0.0
    %1208 = vmatpush2.xpose.msra.mxu0 0.0
    %1209 = vmatprep.subr.mxu0 0.0
    %1210 = vmatpush2.xpose.msra.mxu0 0.0
    %1211 = vmatprep.subr.mxu0 0.0
    %1212 = vmatpush2.xpose.msra.mxu0 0.0
    %1213 = vmatprep.subr.mxu0 0.0
    %1214 = vmatpush2.xpose.msra.mxu0 0.0
    %1215 = vmatprep.subr.mxu0 0.0
    %1216 = vmatpush2.xpose.msra.mxu0 0.0
    %1217 = vmatprep.subr.mxu0 0.0
    %1218 = vmatpush2.xpose.msra.mxu0 0.0
    %1219 = vmatprep.subr.mxu0 0.0
    %1220 = vmatpush2.xpose.msra.mxu0 0.0
    %1221 = vmatprep.mubr.f32.mxu0 0.0
    %1222 = vmatmul.mubr.f32.gmra.mxu0 %v1152
    %v1223 = vpop.f32.mrf.mxu0
    %v1224 = vadd.f32 0.0, %v1223
    %v1225 = vpop.f32.mrf.mxu0
    %1226 = vdwg.mxu0
    %v1227 = vlaneseq
    %v1228 = vshrl.u32 %v1227, 7
    %v1229 = vsub.s32 0, %v1228
    %v1230 = vrot.slane %v1224, %v1229
    %v1231 = vadd.f32 %v1148, %v1230
    %vm1232 = vcmp.gt.f32.partialorder %v1231, 0.0
    %v1233 = vmul.f32 %v1231, 0.01
    %v1234 = vsel %vm1232, %v1231, %v1233
    %v1235 = vsel %vm814, %v1234, -9e+15
    %v1236 = vsel %vm829, %v1235, -inf
    %1237 = vmax.xlane.f32.xlu0 %v1236
    %v1238 = vpop.xlane.xlu0 %1237
    %v1239 = vsub.f32 %v1235, %v1238
    %v1240 = vmul.f32 %v1239, 1.442695
    %v1241 = vpow.pop %v1240
    %v1242 = vsel %vm829, %v1241, 0.0
    %1243 = vadd.xlane.f32.xlu0 %v1242
    %v1244 = vpop.xlane.xlu0 %1243
    %v1245 = vrcp.pop %v1244
    %v1246 = vmul.f32 %v1241, %v1245
    %v1248 = vsel %vm829, %v1246, 0
    %1250 = vmatprep.subr.mxu0 0.0
    %1251 = vmatpush1.msra.mxu0 0.0
    %1252 = vmatprep.subr.mxu0 0.0
    %1253 = vmatpush1.msra.mxu0 0.0
    %1254 = vmatprep.subr.mxu0 0.0
    %1255 = vmatpush1.msra.mxu0 0.0
    %1256 = vmatprep.subr.mxu0 0.0
    %1257 = vmatpush1.msra.mxu0 0.0
    %1258 = vmatprep.subr.mxu0 0.0
    %1259 = vmatpush1.msra.mxu0 0.0
    %1260 = vmatprep.subr.mxu0 0.0
    %1261 = vmatpush1.msra.mxu0 0.0
    %1262 = vmatprep.subr.mxu0 0.0
    %1263 = vmatpush1.msra.mxu0 0.0
    %1264 = vmatprep.subr.mxu0 0.0
    %1265 = vmatpush1.msra.mxu0 0.0
    %1266 = vmatprep.subr.mxu0 0.0
    %1267 = vmatpush1.msra.mxu0 0.0
    %1268 = vmatprep.subr.mxu0 0.0
    %1269 = vmatpush1.msra.mxu0 0.0
    %1270 = vmatprep.subr.mxu0 0.0
    %1271 = vmatpush1.msra.mxu0 0.0
    %1272 = vmatprep.subr.mxu0 0.0
    %1273 = vmatpush1.msra.mxu0 0.0
    %1274 = vmatprep.subr.mxu0 0.0
    %1275 = vmatpush1.msra.mxu0 0.0
    %1276 = vmatprep.subr.mxu0 0.0
    %1277 = vmatpush1.msra.mxu0 0.0
    %1278 = vmatprep.subr.mxu0 0.0
    %1279 = vmatpush1.msra.mxu0 0.0
    %1280 = vmatprep.subr.mxu0 0.0
    %1281 = vmatpush1.msra.mxu0 %v1134
    %1282 = vmatprep.subr.mxu0 0.0
    %1283 = vmatpush2.msra.mxu0 0.0
    %1284 = vmatprep.subr.mxu0 0.0
    %1285 = vmatpush2.msra.mxu0 0.0
    %1286 = vmatprep.subr.mxu0 0.0
    %1287 = vmatpush2.msra.mxu0 0.0
    %1288 = vmatprep.subr.mxu0 0.0
    %1289 = vmatpush2.msra.mxu0 0.0
    %1290 = vmatprep.subr.mxu0 0.0
    %1291 = vmatpush2.msra.mxu0 0.0
    %1292 = vmatprep.subr.mxu0 0.0
    %1293 = vmatpush2.msra.mxu0 0.0
    %1294 = vmatprep.subr.mxu0 0.0
    %1295 = vmatpush2.msra.mxu0 0.0
    %1296 = vmatprep.subr.mxu0 0.0
    %1297 = vmatpush2.msra.mxu0 0.0
    %1298 = vmatprep.subr.mxu0 0.0
    %1299 = vmatpush2.msra.mxu0 0.0
    %1300 = vmatprep.subr.mxu0 0.0
    %1301 = vmatpush2.msra.mxu0 0.0
    %1302 = vmatprep.subr.mxu0 0.0
    %1303 = vmatpush2.msra.mxu0 0.0
    %1304 = vmatprep.subr.mxu0 0.0
    %1305 = vmatpush2.msra.mxu0 0.0
    %1306 = vmatprep.subr.mxu0 0.0
    %1307 = vmatpush2.msra.mxu0 0.0
    %1308 = vmatprep.subr.mxu0 0.0
    %1309 = vmatpush2.msra.mxu0 0.0
    %1310 = vmatprep.subr.mxu0 0.0
    %1311 = vmatpush2.msra.mxu0 0.0
    %1312 = vmatprep.subr.mxu0 0.0
    %1313 = vmatpush2.msra.mxu0 0.0
    %1314 = vmatprep.mubr.f32.mxu0 0.0
    %1315 = vmatmul.mubr.f32.gmra.mxu0 %v1248
    %v1316 = vpop.f32.mrf.mxu0
    %v1317 = vadd.f32 0.0, %v1316
    %v1318 = vpop.f32.mrf.mxu0
    %1319 = vdwg.mxu0
    %1320 = vst.msk [vmem:[#allocation2] sm:$0xff] %vm829, %v1317
    // Predicated region
    $region14: #{model_forward.1} parent=1 // pred_check
      _
    $region15: #{model_forward.1} parent=1 // pred_check_branch
      %1322 = sbr.rel (0) target = $region17
    $region16: #{model_forward.1} parent=1 // pred_region
      %s1324 = ssub.s32 128, 128
      %1325 = vsyncadd [#allocation3], %s1324
      %s1327 = sshll.u32 [#allocation2], 4
      %s1328 = int_to_ptr.vmem [resolvable:$true] %s1327
      %1330 = dma.vmem_to_hbm [thread:$0]  %s1328, 128, %s3, [#allocation3]
    $region17: #{model_forward.1} parent=1 // pred_fallthru
      _
    // Predicated region
    $region18: #{model_forward.1} parent=1 // pred_check
      _
    $region19: #{model_forward.1} parent=1 // pred_check_branch
      %1332 = sbr.rel (0) target = $region21
    $region20: #{model_forward.1} parent=1 // pred_region
      %1333 = dma.done [#allocation3], 128
    $region21: #{model_forward.1} parent=1 // pred_fallthru
      _
    %1334 = vsyncpa [#allocation3], 1

</llo_original>
